<compile_context>
chip_gen: v5e
topology: v5e:2x2
jax: 0.10.0
libtpu: 0.0.40
codegen_flags: <defaults>
</compile_context>

<pallas_src>
import functools

import jax
import jax.numpy as jnp
from jax.experimental import pallas as pl
from jax.experimental.pallas import tpu as pltpu


# ----------------------------------------------------------------------------
# Pallas kernel: one (tm, tn) output tile, looped over K tiles on grid axis 2.
# ----------------------------------------------------------------------------
def _sine_layer_kernel(x_ref, w_ref, b_ref, o_ref, acc_ref, *, omega_0):
    k = pl.program_id(2)

    @pl.when(k == 0)
    def _init():
        acc_ref[...] = jnp.zeros_like(acc_ref)

    # Single MXU matmul per tile, f32 accumulation.
    acc_ref[...] += jnp.dot(x_ref[...], w_ref[...],
                            preferred_element_type=jnp.float32)

    @pl.when(k == pl.num_programs(2) - 1)
    def _finalize():
        # Fused epilogue: bias + omega_0 scaling + sine (EUP), lane-dense store.
        z = omega_0 * (acc_ref[...] + b_ref[...])
        o_ref[...] = jnp.sin(z).astype(o_ref.dtype)


# ----------------------------------------------------------------------------
# Wrapper
# ----------------------------------------------------------------------------
def _round_up(x, m):
    return ((x + m - 1) // m) * m


def sine_layer_forward(x, weight, bias, *, omega_0=30.0, tm=128, tn=128, tk=128):
    """sin(omega_0 * (x @ weight.T + bias)).

    x:      (..., in_features)
    weight: (out_features, in_features)   -- PyTorch nn.Linear layout
    bias:   (out_features,)
    """
    orig_dtype = x.dtype
    in_features = x.shape[-1]
    out_features = weight.shape[0]
    lead = x.shape[:-1]
    M = 1
    for d in lead:
        M *= d

    x2 = x.reshape(M, in_features).astype(jnp.float32)
    wT = jnp.transpose(weight).astype(jnp.float32)          # (K, N)
    b2 = bias.reshape(1, out_features).astype(jnp.float32)  # (1, N)

    # Tile sizes; pad everything to tile multiples (last dims multiples of 128,
    # sublane dims multiples of 8) so all stores are unmasked and lane-dense.
    tm = min(tm, _round_up(M, 8))
    Mp = _round_up(M, tm)
    Kp = _round_up(in_features, tk)
    Np = _round_up(out_features, tn)

    xp = jnp.pad(x2, ((0, Mp - M), (0, Kp - in_features)))
    wp = jnp.pad(wT, ((0, Kp - in_features), (0, Np - out_features)))
    bp = jnp.pad(b2, ((0, 0), (0, Np - out_features)))

    grid = (Mp // tm, Np // tn, Kp // tk)
    kern = functools.partial(_sine_layer_kernel, omega_0=float(omega_0))

    out = pl.pallas_call(
        kern,
        out_shape=jax.ShapeDtypeStruct((Mp, Np), jnp.float32),
        grid_spec=pltpu.PrefetchScalarGridSpec(
            num_scalar_prefetch=0,
            grid=grid,
            in_specs=[
                pl.BlockSpec((tm, tk), lambda i, j, k: (i, k)),   # activations
                pl.BlockSpec((tk, tn), lambda i, j, k: (k, j)),   # weights (K,N)
                pl.BlockSpec((1, tn), lambda i, j, k: (0, j)),    # bias
            ],
            out_specs=pl.BlockSpec((tm, tn), lambda i, j, k: (i, j)),
            scratch_shapes=[pltpu.VMEM((tm, tn), jnp.float32)],
        ),
        compiler_params=pltpu.CompilerParams(
            # M / N independent -> parallel (sharded across v7x's 2 TCs),
            # K is the reduction with a resident accumulator -> arbitrary.
            dimension_semantics=("parallel", "parallel", "arbitrary"),
        ),
    )(xp, wp, bp)

    out = out[:M, :out_features]
    return out.reshape(*lead, out_features).astype(orig_dtype)


# ----------------------------------------------------------------------------
# Parameter init mirroring SineLayer.init_weights (+ nn.Linear default bias).
# ----------------------------------------------------------------------------
def init_sine_layer_params(key, in_features, out_features, *, is_first=False,
                           omega_0=30.0):
    wk, bk = jax.random.split(key)
    if is_first:
        bound_w = 1.0 / in_features
    else:
        bound_w = float(jnp.sqrt(6.0 / in_features)) / omega_0
    weight = jax.random.uniform(wk, (out_features, in_features), jnp.float32,
                                minval=-bound_w, maxval=bound_w)
    bound_b = 1.0 / float(jnp.sqrt(in_features))
    bias = jax.random.uniform(bk, (out_features,), jnp.float32,
                              minval=-bound_b, maxval=bound_b)
    return weight, bias


# ----------------------------------------------------------------------------
if __name__ == "__main__":
    # Small SIREN-like shapes: 2 coordinate batches of 256 points,
    # in_features=64, out_features=128 (hidden SineLayer), omega_0=30.
    B, P = 2, 256
    in_features, out_features = 64, 128
    omega_0 = 30.0

    key = jax.random.PRNGKey(0)
    xk, pk = jax.random.split(key)
    x = jax.random.normal(xk, (B, P, in_features), jnp.float32)
    weight, bias = init_sine_layer_params(pk, in_features, out_features,
                                          is_first=True, omega_0=omega_0)

    fwd = jax.jit(functools.partial(sine_layer_forward, omega_0=omega_0))
    out = jax.block_until_ready(fwd(x, weight, bias))

    # Reference (pure JAX) check of forward semantics.
    ref = jnp.sin(omega_0 * (jnp.einsum("bpi,oi->bpo", x, weight) + bias))

    assert out.shape == (B, P, out_features), out.shape
    assert out.dtype == jnp.float32
    assert bool(jnp.all(jnp.isfinite(out)))
    assert bool(jnp.allclose(out, ref, atol=2e-4, rtol=2e-4))
    # TODO(synk): forward_with_intermediate (returning the pre-sine value too)
    # is not exposed; it would just be a second output written in the epilogue.
    print("KERNEL_OK")
</pallas_src>

<mosaic_0001>
module attributes {stable_mosaic.version = 11 : i64} {
  func.func @_sine_layer_kernel(%arg0: i32, %arg1: i32, %arg2: i32, %arg3: memref<128x128xf32, #tpu.memory_space<vmem>>, %arg4: memref<128x128xf32, #tpu.memory_space<vmem>>, %arg5: memref<1x128xf32, #tpu.memory_space<vmem>>, %arg6: memref<128x128xf32, #tpu.memory_space<vmem>>, %arg7: memref<128x128xf32, #tpu.memory_space<vmem>>) attributes {dimension_semantics = [#tpu.dimension_semantics<parallel>, #tpu.dimension_semantics<parallel>, #tpu.dimension_semantics<arbitrary>], iteration_bounds = array<i64: 4, 1, 1>, scalar_prefetch = 0 : i64, scratch_operands = 1 : i64, tpu.core_type = #tpu.core_type<tc>, window_params = [{transform_indices = @transform_0, window_bounds = array<i64: 128, 128>}, {transform_indices = @transform_1, window_bounds = array<i64: 128, 128>}, {transform_indices = @transform_2, window_bounds = array<i64: 1, 128>}, {transform_indices = @transform_3, window_bounds = array<i64: 128, 128>}]} {
    %c0_i32 = arith.constant 0 : i32
    %0 = arith.cmpi eq, %arg2, %c0_i32 : i32
    %1 = arith.extui %0 : i1 to i32
    %c0_i32_0 = arith.constant 0 : i32
    %2 = arith.cmpi ne, %1, %c0_i32_0 : i32
    scf.if %2 {
      %cst_10 = arith.constant 0.000000e+00 : f32
      %12 = vector.broadcast %cst_10 : f32 to vector<128x128xf32>
      %c0_11 = arith.constant 0 : index
      %c0_12 = arith.constant 0 : index
      %13 = vector.load %arg7[%c0_11, %c0_12] : memref<128x128xf32, #tpu.memory_space<vmem>>, vector<128x128xf32>
      tpu.vector_store %arg7[%c0_11, %c0_12], %12 {strides = array<i32>} : memref<128x128xf32, #tpu.memory_space<vmem>>, vector<128x128xf32>,
    } else {
    }
    %c0 = arith.constant 0 : index
    %c0_1 = arith.constant 0 : index
    %3 = vector.load %arg7[%c0, %c0_1] : memref<128x128xf32, #tpu.memory_space<vmem>>, vector<128x128xf32>
    %c0_2 = arith.constant 0 : index
    %c0_3 = arith.constant 0 : index
    %4 = vector.load %arg3[%c0_2, %c0_3] : memref<128x128xf32, #tpu.memory_space<vmem>>, vector<128x128xf32>
    %c0_4 = arith.constant 0 : index
    %c0_5 = arith.constant 0 : index
    %5 = vector.load %arg4[%c0_4, %c0_5] : memref<128x128xf32, #tpu.memory_space<vmem>>, vector<128x128xf32>
    %cst = arith.constant dense<0.000000e+00> : vector<128x128xf32>
    %6 = tpu.matmul %4, %5, %cst {dimension_numbers = #tpu.dot_dimension_numbers<[1], [0], [0], [1], [0, 0, 1, 1], [], []>} : vector<128x128xf32>, vector<128x128xf32>, vector<128x128xf32> -> vector<128x128xf32>
    %7 = arith.addf %3, %6 : vector<128x128xf32>
    %c0_6 = arith.constant 0 : index
    %c0_7 = arith.constant 0 : index
    %8 = vector.load %arg7[%c0_6, %c0_7] : memref<128x128xf32, #tpu.memory_space<vmem>>, vector<128x128xf32>
    tpu.vector_store %arg7[%c0_6, %c0_7], %7 {strides = array<i32>} : memref<128x128xf32, #tpu.memory_space<vmem>>, vector<128x128xf32>,
    %c0_i32_8 = arith.constant 0 : i32
    %9 = arith.cmpi eq, %arg2, %c0_i32_8 : i32
    %10 = arith.extui %9 : i1 to i32
    %c0_i32_9 = arith.constant 0 : i32
    %11 = arith.cmpi ne, %10, %c0_i32_9 : i32
    scf.if %11 {
      %c0_10 = arith.constant 0 : index
      %c0_11 = arith.constant 0 : index
      %12 = vector.load %arg7[%c0_10, %c0_11] : memref<128x128xf32, #tpu.memory_space<vmem>>, vector<128x128xf32>
      %c0_12 = arith.constant 0 : index
      %c0_13 = arith.constant 0 : index
      %13 = vector.load %arg5[%c0_12, %c0_13] : memref<1x128xf32, #tpu.memory_space<vmem>>, vector<1x128xf32>
      %14 = vector.broadcast %13 : vector<1x128xf32> to vector<128x128xf32>
      %15 = arith.addf %12, %14 : vector<128x128xf32>
      %cst_14 = arith.constant 3.000000e+01 : f32
      %16 = vector.broadcast %cst_14 : f32 to vector<128x128xf32>
      %17 = arith.mulf %16, %15 : vector<128x128xf32>
      %18 = math.sin %17 : vector<128x128xf32>
      %c0_15 = arith.constant 0 : index
      %c0_16 = arith.constant 0 : index
      %19 = vector.load %arg6[%c0_15, %c0_16] : memref<128x128xf32, #tpu.memory_space<vmem>>, vector<128x128xf32>
      tpu.vector_store %arg6[%c0_15, %c0_16], %18 {strides = array<i32>} : memref<128x128xf32, #tpu.memory_space<vmem>>, vector<128x128xf32>,
    } else {
    }
    return
  }
  func.func @transform_0(%arg0: i32, %arg1: i32, %arg2: i32) -> (i32, i32) {
    %c0_i32 = arith.constant 0 : i32
    return %arg0, %arg2 : i32, i32
  }
  func.func @transform_1(%arg0: i32, %arg1: i32, %arg2: i32) -> (i32, i32) {
    %c0_i32 = arith.constant 0 : i32
    return %arg2, %arg1 : i32, i32
  }
  func.func @transform_2(%arg0: i32, %arg1: i32, %arg2: i32) -> (i32, i32) {
    %c0_i32 = arith.constant 0 : i32
    %c0_i32_0 = arith.constant 0 : i32
    return %c0_i32, %arg1 : i32, i32
  }
  func.func @transform_3(%arg0: i32, %arg1: i32, %arg2: i32) -> (i32, i32) {
    %c0_i32 = arith.constant 0 : i32
    return %arg0, %arg1 : i32, i32
  }
}

</mosaic_0001>

<llo_original>
// kernel: sine_layer_forward.1
$region0: #{sine_layer_forward.1}
  #allocation0 [shape = 'u32[]', space=smem, size = 0x4, offset = 0x4, fixed_abs, tag = 'smem constant byte address 0x4 - core index']
  #allocation1 [shape = 'u32[72,128]{1,0:T(1,128)}', space=vmem, size = 0x9000, scoped, tag = 'internal scratch']
  #allocation2 [shape = 'f32[128,128]{1,0:T(8,128)}', space=vmem, size = 0x10000, scoped, tag = 'scratch operand']
  %s0 = inlined_call_operand.vmem [shape: f32[512,128], index: 0, kind: input, shape index: {}]
  %s1 = inlined_call_operand.vmem [shape: f32[128,128], index: 1, kind: input, shape index: {}]
  %s2 = inlined_call_operand.vmem [shape: f32[1,128], index: 2, kind: input, shape index: {}]
  %s3 = inlined_call_operand.hbm [shape: f32[512,128], index: 3, kind: output, shape index: {}]
  %s4 = sld [smem:[#allocation0]]
  $region53: #{sine_layer_forward.1} parent=0
    _
  %s6 = ssub.s32 1, %s4
  %s7 = scalar_select 0, %s6, %s4
  $region1: #{sine_layer_forward.1} parent=0
    #allocation3 [shape = 'u8[131072]{0}', space=vmem, size = 0x20000, scoped, tag = 'output window, operand 0']
    #allocation4 [shape = 's32[2]{0}', space=sflag, size = 0x8, scoped, tag = 'scoped memory for sine_layer_forward.1']
    %8 = vsyncpa [#allocation4], 0
    %s9 = scalar_lea.sflag [#allocation4], 1
    %10 = vsyncpa %s9, 0
    loop: start=0, step=1, limit=6
    $region2: #{sine_layer_forward.1} parent=1 // loop_pre_header
      _
    $region3: #{sine_layer_forward.1} parent=1 // loop_header
      %s12 = sphi 0, %s16
      %p13 = scmp.ge.s32.totalorder %s12, 6
      %s19 = sphi 0, %s38
      %s20 = sphi 0, %s34
      %s21 = sphi 0, %s30
      %s22 = sphi 0, %s19
      %s23 = sphi 0, %s20
      %s24 = sphi 0, %s21
      %s25 = sphi 0, %s22
      %s26 = sphi 0, %s23
      %s27 = sphi 0, %s24
      %s43 = sphi 0, %s45
      %s46 = sphi 0, %s43
      %s47 = sphi 0, %s46
      %s63 = sphi 0, %s47
      %s71 = sphi 0, %s73
      %s74 = sphi 0, %s71
      %s75 = sphi 0, %s74
      %s91 = sphi 0, %s75
      %s97 = sphi 0, %s99
      %s100 = sphi 0, %s97
      %s101 = sphi 0, %s100
      %s117 = sphi 0, %s101
      %s125 = sphi 0, %s127
      %s128 = sphi 0, %s125
      %s129 = sphi 0, %s128
      %s145 = sphi 0, %s129
    $region4: #{sine_layer_forward.1} parent=1 // loop_header_branch
      %15 = sbr.rel (%p13) target = $region8
    $region5: #{sine_layer_forward.1} parent=1 // loop_body
      %s17 = ssub.s32 %s12, 1
      %s18 = ssub.s32 %s12, 2
      %s28 = sadd.s32 1, %s21
      %p29 = scmp.ge.s32.totalorder %s28, 1
      %s30 = scalar_select %p29, 0, %s28
      %s31 = sadd.s32 1, %s20
      %s32 = scalar_select %p29, %s31, %s20
      %p33 = scmp.ge.s32.totalorder %s32, 1
      %s34 = scalar_select %p33, 0, %s32
      %s35 = sadd.s32 1, %s19
      %s36 = scalar_select %p33, %s35, %s19
      %p37 = scmp.ge.s32.totalorder %s36, 4
      %s38 = scalar_select %p37, 0, %s36
      %s39 = ssub.s32 %s19, %s38
      %s40 = ssub.s32 %s21, %s30
      %s41 = sor.u32 %s39, %s40
      %p42 = scmp.eq.s32.totalorder %s41, 0
      %s44 = sadd.s32 %s43, 1
      %s45 = scalar_select %p42, %s43, %s44
      %p48 = pneg %p42
      %p49 = scmp.eq.s32.totalorder %s12, 3
      %p50 = por %p48, %p49
      %p51 = scmp.ne.s32.totalorder %s43, %s46
      %p52 = scmp.eq.s32.totalorder %s12, 0
      %p53 = por %p51, %p52
      %p54 = scmp.ne.s32.totalorder %s43, %s46
      %p55 = scmp.eq.s32.totalorder %s17, 3
      %p56 = por %p54, %p55
      %p57 = scmp.ne.s32.totalorder %s46, %s47
      %p58 = scmp.eq.s32.totalorder %s17, 0
      %p59 = por %p57, %p58
      %p60 = scmp.ne.s32.totalorder %s46, %s47
      %p61 = scmp.eq.s32.totalorder %s18, 3
      %p62 = por %p60, %p61
      %p64 = scmp.ne.s32.totalorder %s47, %s63
      %p65 = scmp.eq.s32.totalorder %s18, 0
      %p66 = por %p64, %p65
      %s67 = ssub.s32 %s21, %s30
      %s68 = ssub.s32 %s20, %s34
      %s69 = sor.u32 %s67, %s68
      %p70 = scmp.eq.s32.totalorder %s69, 0
      %s72 = sadd.s32 %s71, 1
      %s73 = scalar_select %p70, %s71, %s72
      %p76 = pneg %p70
      %p77 = scmp.eq.s32.totalorder %s12, 3
      %p78 = por %p76, %p77
      %p79 = scmp.ne.s32.totalorder %s71, %s74
      %p80 = scmp.eq.s32.totalorder %s12, 0
      %p81 = por %p79, %p80
      %p82 = scmp.ne.s32.totalorder %s71, %s74
      %p83 = scmp.eq.s32.totalorder %s17, 3
      %p84 = por %p82, %p83
      %p85 = scmp.ne.s32.totalorder %s74, %s75
      %p86 = scmp.eq.s32.totalorder %s17, 0
      %p87 = por %p85, %p86
      %p88 = scmp.ne.s32.totalorder %s74, %s75
      %p89 = scmp.eq.s32.totalorder %s18, 3
      %p90 = por %p88, %p89
      %p92 = scmp.ne.s32.totalorder %s75, %s91
      %p93 = scmp.eq.s32.totalorder %s18, 0
      %p94 = por %p92, %p93
      %s95 = ssub.s32 %s20, %s34
      %p96 = scmp.eq.s32.totalorder %s95, 0
      %s98 = sadd.s32 %s97, 1
      %s99 = scalar_select %p96, %s97, %s98
      %p102 = pneg %p96
      %p103 = scmp.eq.s32.totalorder %s12, 3
      %p104 = por %p102, %p103
      %p105 = scmp.ne.s32.totalorder %s97, %s100
      %p106 = scmp.eq.s32.totalorder %s12, 0
      %p107 = por %p105, %p106
      %p108 = scmp.ne.s32.totalorder %s97, %s100
      %p109 = scmp.eq.s32.totalorder %s17, 3
      %p110 = por %p108, %p109
      %p111 = scmp.ne.s32.totalorder %s100, %s101
      %p112 = scmp.eq.s32.totalorder %s17, 0
      %p113 = por %p111, %p112
      %p114 = scmp.ne.s32.totalorder %s100, %s101
      %p115 = scmp.eq.s32.totalorder %s18, 3
      %p116 = por %p114, %p115
      %p118 = scmp.ne.s32.totalorder %s101, %s117
      %p119 = scmp.eq.s32.totalorder %s18, 0
      %p120 = por %p118, %p119
      %s121 = ssub.s32 %s19, %s38
      %s122 = ssub.s32 %s20, %s34
      %s123 = sor.u32 %s121, %s122
      %p124 = scmp.eq.s32.totalorder %s123, 0
      %s126 = sadd.s32 %s125, 1
      %s127 = scalar_select %p124, %s125, %s126
      %p130 = pneg %p124
      %p131 = scmp.eq.s32.totalorder %s12, 3
      %p132 = por %p130, %p131
      %p133 = scmp.ne.s32.totalorder %s125, %s128
      %p134 = scmp.eq.s32.totalorder %s12, 0
      %p135 = por %p133, %p134
      %p136 = scmp.ne.s32.totalorder %s125, %s128
      %p137 = scmp.eq.s32.totalorder %s17, 3
      %p138 = por %p136, %p137
      %p139 = scmp.ne.s32.totalorder %s128, %s129
      %p140 = scmp.eq.s32.totalorder %s17, 0
      %p141 = por %p139, %p140
      %p142 = scmp.ne.s32.totalorder %s128, %s129
      %p143 = scmp.eq.s32.totalorder %s18, 3
      %p144 = por %p142, %p143
      %p146 = scmp.ne.s32.totalorder %s129, %s145
      %p147 = scmp.eq.s32.totalorder %s18, 0
      %p148 = por %p146, %p147
      %p149 = scmp.le.s32.totalorder 1, %s12
      %p150 = scmp.lt.s32.totalorder %s12, 5
      %p151 = pnand %p149, %p150
      %p152 = pneg %p151
      // Predicated region
      $region9: #{sine_layer_forward.1} parent=5 // pred_check
        _
      $region10: #{sine_layer_forward.1} parent=5 // pred_check_branch
        %154 = sbr.rel (%p151) target = $region12
      $region11: #{sine_layer_forward.1} parent=5 // pred_region
        %s155 = ssub.s32 %s12, 1
        // Predicated region
        $region13: #{sine_layer_forward.1} parent=11 // pred_check
          %p156 = pneg %p87
        $region14: #{sine_layer_forward.1} parent=11 // pred_check_branch
          %158 = sbr.rel (%p156) target = $region16
        $region15: #{sine_layer_forward.1} parent=11 // pred_region
          %s159 = smul.u32 16, %s24
          %p160 = scmp.lt.s32.totalorder %s159, 15
          %s161 = scalar_select %p160, %s159, 15
          %p162 = scmp.lt.s32.totalorder %s23, 0
          %s163 = scalar_select %p162, %s23, 0
          %s164 = sadd.s32 %s163, %s161
          %s165 = smul.addr %s164, 8
          %s166 = scalar_lea.vmem %s1, %s165
          %s167 = smul.u32 16, %s24
        $region16: #{sine_layer_forward.1} parent=11 // pred_fallthru
          _
        // Predicated region
        $region17: #{sine_layer_forward.1} parent=11 // pred_check
          %p168 = pneg %p113
        $region18: #{sine_layer_forward.1} parent=11 // pred_check_branch
          %170 = sbr.rel (%p168) target = $region20
        $region19: #{sine_layer_forward.1} parent=11 // pred_region
          %p171 = scmp.lt.s32.totalorder %s23, 0
          %s172 = scalar_select %p171, %s23, 0
          %s173 = scalar_lea.vmem %s2, %s172
        $region20: #{sine_layer_forward.1} parent=11 // pred_fallthru
          _
      $region12: #{sine_layer_forward.1} parent=5 // pred_fallthru
        _
      %p174 = scmp.lt.s32.totalorder %s12, 4
      // Predicated region
      $region21: #{sine_layer_forward.1} parent=5 // pred_check
        %p175 = pneg %p174
      $region22: #{sine_layer_forward.1} parent=5 // pred_check_branch
        %177 = sbr.rel (%p175) target = $region24
      $region23: #{sine_layer_forward.1} parent=5 // pred_region
        // Predicated region
        $region25: #{sine_layer_forward.1} parent=23 // pred_check
          %p178 = pneg %p53
        $region26: #{sine_layer_forward.1} parent=23 // pred_check_branch
          %180 = sbr.rel (%p178) target = $region28
        $region27: #{sine_layer_forward.1} parent=23 // pred_region
          %s181 = smul.u32 16, %s19
          %p182 = scmp.lt.s32.totalorder %s181, 63
          %s183 = scalar_select %p182, %s181, 63
          %p184 = scmp.lt.s32.totalorder %s21, 0
          %s185 = scalar_select %p184, %s21, 0
          %s186 = sadd.s32 %s185, %s183
          %s187 = smul.addr %s186, 8
          %s188 = scalar_lea.vmem %s0, %s187
          %s189 = smul.u32 16, %s19
        $region28: #{sine_layer_forward.1} parent=23 // pred_fallthru
          _
      $region24: #{sine_layer_forward.1} parent=5 // pred_fallthru
        _
      %p190 = scmp.le.s32.totalorder 1, %s12
      %p191 = scmp.lt.s32.totalorder %s12, 5
      %p192 = pnand %p190, %p191
      %p193 = pneg %p192
      // Predicated region
      $region29: #{sine_layer_forward.1} parent=5 // pred_check
        _
      $region30: #{sine_layer_forward.1} parent=5 // pred_check_branch
        %195 = sbr.rel (%p192) target = $region32
      $region31: #{sine_layer_forward.1} parent=5 // pred_region
        %s196 = ssub.s32 %s12, 1
        %s197 = smul.u32 16, %s22
        %p198 = scmp.lt.s32.totalorder %s197, 63
        %s199 = scalar_select %p198, %s197, 63
        %p200 = scmp.lt.s32.totalorder %s24, 0
        %s201 = scalar_select %p200, %s24, 0
        %s202 = sadd.s32 %s201, %s199
        %s203 = smul.addr %s202, 8
        %s204 = scalar_lea.vmem %s0, %s203
        %p205 = pneg %p59
        %p206 = pneg %p56
        %s207 = smul.u32 16, %s24
        %p208 = scmp.lt.s32.totalorder %s207, 15
        %s209 = scalar_select %p208, %s207, 15
        %p210 = scmp.lt.s32.totalorder %s23, 0
        %s211 = scalar_select %p210, %s23, 0
        %s212 = sadd.s32 %s211, %s209
        %s213 = smul.addr %s212, 8
        %s214 = scalar_lea.vmem %s1, %s213
        %p215 = pneg %p87
        %p216 = pneg %p84
        %p217 = scmp.lt.s32.totalorder %s23, 0
        %s218 = scalar_select %p217, %s23, 0
        %s219 = scalar_lea.vmem %s2, %s218
        %p220 = pneg %p113
        %p221 = pneg %p110
        %p222 = pneg %p141
        %p223 = pneg %p138
        %s224 = sand.u32 %s128, 1
        %s225 = scalar_lea.sflag [#allocation4], %s224
        %s226 = sand.u32 %s128, 1
        %s227 = smul.addr %s226, 128
        %s228 = scalar_lea.vmem [#allocation3], %s227
        %s229 = smul.u32 16, %s22
        %p230 = scmp.lt.s32.totalorder %s229, 63
        %s231 = scalar_select %p230, %s229, 63
        %p232 = scmp.lt.s32.totalorder %s24, 0
        %s233 = scalar_select %p232, %s24, 0
        %s234 = sadd.s32 %s233, %s231
        %s235 = smul.addr %s234, 8
        %s236 = scalar_lea.vmem %s0, %s235
        %s237 = smul.u32 16, %s22
        %s238 = smul.u32 16, %s24
        %p239 = scmp.lt.s32.totalorder %s238, 15
        %s240 = scalar_select %p239, %s238, 15
        %p241 = scmp.lt.s32.totalorder %s23, 0
        %s242 = scalar_select %p241, %s23, 0
        %s243 = sadd.s32 %s242, %s240
        %s244 = smul.addr %s243, 8
        %s245 = scalar_lea.vmem %s1, %s244
        %s246 = smul.u32 16, %s24
        %p247 = scmp.lt.s32.totalorder %s23, 0
        %s248 = scalar_select %p247, %s23, 0
        %s249 = scalar_lea.vmem %s2, %s248
        %s250 = smul.u32 16, %s22
        %p251 = scmp.eq.s32.totalorder %s24, 0
        // Predicated region
        $region33: #{sine_layer_forward.1} parent=31 // pred_check
          %p252 = pneg %p251
        $region34: #{sine_layer_forward.1} parent=31 // pred_check_branch
          %254 = sbr.rel (%p252) target = $region36
        $region35: #{sine_layer_forward.1} parent=31 // pred_region
          %255 = vst [vmem:[#allocation2] sm:$0xff] 0.0
          %256 = vst [vmem:[#allocation2 + $0x8] sm:$0xff] 0.0
          %257 = vst [vmem:[#allocation2 + $0x10] sm:$0xff] 0.0
          %258 = vst [vmem:[#allocation2 + $0x18] sm:$0xff] 0.0
          %259 = vst [vmem:[#allocation2 + $0x20] sm:$0xff] 0.0
          %260 = vst [vmem:[#allocation2 + $0x28] sm:$0xff] 0.0
          %261 = vst [vmem:[#allocation2 + $0x30] sm:$0xff] 0.0
          %262 = vst [vmem:[#allocation2 + $0x38] sm:$0xff] 0.0
          %263 = vst [vmem:[#allocation2 + $0x40] sm:$0xff] 0.0
          %264 = vst [vmem:[#allocation2 + $0x48] sm:$0xff] 0.0
          %265 = vst [vmem:[#allocation2 + $0x50] sm:$0xff] 0.0
          %266 = vst [vmem:[#allocation2 + $0x58] sm:$0xff] 0.0
          %267 = vst [vmem:[#allocation2 + $0x60] sm:$0xff] 0.0
          %268 = vst [vmem:[#allocation2 + $0x68] sm:$0xff] 0.0
          %269 = vst [vmem:[#allocation2 + $0x70] sm:$0xff] 0.0
          %270 = vst [vmem:[#allocation2 + $0x78] sm:$0xff] 0.0
        $region36: #{sine_layer_forward.1} parent=31 // pred_fallthru
          _
        %v271 = vld [vmem:[#allocation2] sm:$0xff]
        %v272 = vld [vmem:[#allocation2 + $0x8] sm:$0xff]
        %v273 = vld [vmem:[#allocation2 + $0x10] sm:$0xff]
        %v274 = vld [vmem:[#allocation2 + $0x18] sm:$0xff]
        %v275 = vld [vmem:[#allocation2 + $0x20] sm:$0xff]
        %v276 = vld [vmem:[#allocation2 + $0x28] sm:$0xff]
        %v277 = vld [vmem:[#allocation2 + $0x30] sm:$0xff]
        %v278 = vld [vmem:[#allocation2 + $0x38] sm:$0xff]
        %v279 = vld [vmem:[#allocation2 + $0x40] sm:$0xff]
        %v280 = vld [vmem:[#allocation2 + $0x48] sm:$0xff]
        %v281 = vld [vmem:[#allocation2 + $0x50] sm:$0xff]
        %v282 = vld [vmem:[#allocation2 + $0x58] sm:$0xff]
        %v283 = vld [vmem:[#allocation2 + $0x60] sm:$0xff]
        %v284 = vld [vmem:[#allocation2 + $0x68] sm:$0xff]
        %v285 = vld [vmem:[#allocation2 + $0x70] sm:$0xff]
        %v286 = vld [vmem:[#allocation2 + $0x78] sm:$0xff]
        %v287 = vld [vmem:[%s236] sm:$0xff]
        %v288 = vld [vmem:[%s236 + $0x8] sm:$0xff]
        %v289 = vld [vmem:[%s236 + $0x10] sm:$0xff]
        %v290 = vld [vmem:[%s236 + $0x18] sm:$0xff]
        %v291 = vld [vmem:[%s236 + $0x20] sm:$0xff]
        %v292 = vld [vmem:[%s236 + $0x28] sm:$0xff]
        %v293 = vld [vmem:[%s236 + $0x30] sm:$0xff]
        %v294 = vld [vmem:[%s236 + $0x38] sm:$0xff]
        %v295 = vld [vmem:[%s236 + $0x40] sm:$0xff]
        %v296 = vld [vmem:[%s236 + $0x48] sm:$0xff]
        %v297 = vld [vmem:[%s236 + $0x50] sm:$0xff]
        %v298 = vld [vmem:[%s236 + $0x58] sm:$0xff]
        %v299 = vld [vmem:[%s236 + $0x60] sm:$0xff]
        %v300 = vld [vmem:[%s236 + $0x68] sm:$0xff]
        %v301 = vld [vmem:[%s236 + $0x70] sm:$0xff]
        %v302 = vld [vmem:[%s236 + $0x78] sm:$0xff]
        %v303 = vld [vmem:[%s245] sm:$0xff]
        %v304 = vld [vmem:[%s245 + $0x8] sm:$0xff]
        %v305 = vld [vmem:[%s245 + $0x10] sm:$0xff]
        %v306 = vld [vmem:[%s245 + $0x18] sm:$0xff]
        %v307 = vld [vmem:[%s245 + $0x20] sm:$0xff]
        %v308 = vld [vmem:[%s245 + $0x28] sm:$0xff]
        %v309 = vld [vmem:[%s245 + $0x30] sm:$0xff]
        %v310 = vld [vmem:[%s245 + $0x38] sm:$0xff]
        %v311 = vld [vmem:[%s245 + $0x40] sm:$0xff]
        %v312 = vld [vmem:[%s245 + $0x48] sm:$0xff]
        %v313 = vld [vmem:[%s245 + $0x50] sm:$0xff]
        %v314 = vld [vmem:[%s245 + $0x58] sm:$0xff]
        %v315 = vld [vmem:[%s245 + $0x60] sm:$0xff]
        %v316 = vld [vmem:[%s245 + $0x68] sm:$0xff]
        %v317 = vld [vmem:[%s245 + $0x70] sm:$0xff]
        %v318 = vld [vmem:[%s245 + $0x78] sm:$0xff]
        %319 = vmatpush.msra.mxu0 %v318
        %320 = vmatpush.msra.mxu0 %v317
        %321 = vmatpush.msra.mxu0 %v316
        %322 = vmatpush.msra.mxu0 %v315
        %323 = vmatpush.msra.mxu0 %v314
        %324 = vmatpush.msra.mxu0 %v313
        %325 = vmatpush.msra.mxu0 %v312
        %326 = vmatpush.msra.mxu0 %v311
        %327 = vmatpush.msra.mxu0 %v310
        %328 = vmatpush.msra.mxu0 %v309
        %329 = vmatpush.msra.mxu0 %v308
        %330 = vmatpush.msra.mxu0 %v307
        %331 = vmatpush.msra.mxu0 %v306
        %332 = vmatpush.msra.mxu0 %v305
        %333 = vmatpush.msra.mxu0 %v304
        %334 = vmatpush.msra.mxu0 %v303
        %335 = vmatmul.f32.gmra.mxu0 %v287
        %v336 = vpop.f32.mrf.mxu0
        %v337 = vadd.f32 0.0, %v336
        %338 = vmatmul.f32.gmra.mxu0 %v288
        %v339 = vpop.f32.mrf.mxu0
        %v340 = vadd.f32 0.0, %v339
        %341 = vmatmul.f32.gmra.mxu0 %v289
        %v342 = vpop.f32.mrf.mxu0
        %v343 = vadd.f32 0.0, %v342
        %344 = vmatmul.f32.gmra.mxu0 %v290
        %v345 = vpop.f32.mrf.mxu0
        %v346 = vadd.f32 0.0, %v345
        %347 = vmatmul.f32.gmra.mxu0 %v291
        %v348 = vpop.f32.mrf.mxu0
        %v349 = vadd.f32 0.0, %v348
        %350 = vmatmul.f32.gmra.mxu0 %v292
        %v351 = vpop.f32.mrf.mxu0
        %v352 = vadd.f32 0.0, %v351
        %353 = vmatmul.f32.gmra.mxu0 %v293
        %v354 = vpop.f32.mrf.mxu0
        %v355 = vadd.f32 0.0, %v354
        %356 = vmatmul.f32.gmra.mxu0 %v294
        %v357 = vpop.f32.mrf.mxu0
        %v358 = vadd.f32 0.0, %v357
        %359 = vmatmul.f32.gmra.mxu0 %v295
        %v360 = vpop.f32.mrf.mxu0
        %v361 = vadd.f32 0.0, %v360
        %362 = vmatmul.f32.gmra.mxu0 %v296
        %v363 = vpop.f32.mrf.mxu0
        %v364 = vadd.f32 0.0, %v363
        %365 = vmatmul.f32.gmra.mxu0 %v297
        %v366 = vpop.f32.mrf.mxu0
        %v367 = vadd.f32 0.0, %v366
        %368 = vmatmul.f32.gmra.mxu0 %v298
        %v369 = vpop.f32.mrf.mxu0
        %v370 = vadd.f32 0.0, %v369
        %371 = vmatmul.f32.gmra.mxu0 %v299
        %v372 = vpop.f32.mrf.mxu0
        %v373 = vadd.f32 0.0, %v372
        %374 = vmatmul.f32.gmra.mxu0 %v300
        %v375 = vpop.f32.mrf.mxu0
        %v376 = vadd.f32 0.0, %v375
        %377 = vmatmul.f32.gmra.mxu0 %v301
        %v378 = vpop.f32.mrf.mxu0
        %v379 = vadd.f32 0.0, %v378
        %380 = vmatmul.f32.gmra.mxu0 %v302
        %v381 = vpop.f32.mrf.mxu0
        %v382 = vadd.f32 0.0, %v381
        %383 = vdwg.mxu0
        %v384 = vadd.f32 %v271, %v337
        %v385 = vadd.f32 %v272, %v340
        %v386 = vadd.f32 %v273, %v343
        %v387 = vadd.f32 %v274, %v346
        %v388 = vadd.f32 %v275, %v349
        %v389 = vadd.f32 %v276, %v352
        %v390 = vadd.f32 %v277, %v355
        %v391 = vadd.f32 %v278, %v358
        %v392 = vadd.f32 %v279, %v361
        %v393 = vadd.f32 %v280, %v364
        %v394 = vadd.f32 %v281, %v367
        %v395 = vadd.f32 %v282, %v370
        %v396 = vadd.f32 %v283, %v373
        %v397 = vadd.f32 %v284, %v376
        %v398 = vadd.f32 %v285, %v379
        %v399 = vadd.f32 %v286, %v382
        %400 = vst [vmem:[#allocation2] sm:$0xff] %v384
        %401 = vst [vmem:[#allocation2 + $0x8] sm:$0xff] %v385
        %402 = vst [vmem:[#allocation2 + $0x10] sm:$0xff] %v386
        %403 = vst [vmem:[#allocation2 + $0x18] sm:$0xff] %v387
        %404 = vst [vmem:[#allocation2 + $0x20] sm:$0xff] %v388
        %405 = vst [vmem:[#allocation2 + $0x28] sm:$0xff] %v389
        %406 = vst [vmem:[#allocation2 + $0x30] sm:$0xff] %v390
        %407 = vst [vmem:[#allocation2 + $0x38] sm:$0xff] %v391
        %408 = vst [vmem:[#allocation2 + $0x40] sm:$0xff] %v392
        %409 = vst [vmem:[#allocation2 + $0x48] sm:$0xff] %v393
        %410 = vst [vmem:[#allocation2 + $0x50] sm:$0xff] %v394
        %411 = vst [vmem:[#allocation2 + $0x58] sm:$0xff] %v395
        %412 = vst [vmem:[#allocation2 + $0x60] sm:$0xff] %v396
        %413 = vst [vmem:[#allocation2 + $0x68] sm:$0xff] %v397
        %414 = vst [vmem:[#allocation2 + $0x70] sm:$0xff] %v398
        %415 = vst [vmem:[#allocation2 + $0x78] sm:$0xff] %v399
        // Predicated region
        $region37: #{sine_layer_forward.1} parent=31 // pred_check
          %p416 = pneg %p251
        $region38: #{sine_layer_forward.1} parent=31 // pred_check_branch
          %418 = sbr.rel (%p416) target = $region40
        $region39: #{sine_layer_forward.1} parent=31 // pred_region
          %v419 = vld [vmem:[#allocation2] sm:$0xff]
          %v420 = vld [vmem:[#allocation2 + $0x8] sm:$0xff]
          %v421 = vld [vmem:[#allocation2 + $0x10] sm:$0xff]
          %v422 = vld [vmem:[#allocation2 + $0x18] sm:$0xff]
          %v423 = vld [vmem:[#allocation2 + $0x20] sm:$0xff]
          %v424 = vld [vmem:[#allocation2 + $0x28] sm:$0xff]
          %v425 = vld [vmem:[#allocation2 + $0x30] sm:$0xff]
          %v426 = vld [vmem:[#allocation2 + $0x38] sm:$0xff]
          %v427 = vld [vmem:[#allocation2 + $0x40] sm:$0xff]
          %v428 = vld [vmem:[#allocation2 + $0x48] sm:$0xff]
          %v429 = vld [vmem:[#allocation2 + $0x50] sm:$0xff]
          %v430 = vld [vmem:[#allocation2 + $0x58] sm:$0xff]
          %v431 = vld [vmem:[#allocation2 + $0x60] sm:$0xff]
          %v432 = vld [vmem:[#allocation2 + $0x68] sm:$0xff]
          %v433 = vld [vmem:[#allocation2 + $0x70] sm:$0xff]
          %v434 = vld [vmem:[#allocation2 + $0x78] sm:$0xff]
          %v435 = vld [vmem:[%s249] sm:$0x1]
          %v437 = vperm.slane %v435, 0
          %v439 = vadd.f32 %v419, %v437
          %v440 = vadd.f32 %v420, %v437
          %v441 = vadd.f32 %v421, %v437
          %v442 = vadd.f32 %v422, %v437
          %v443 = vadd.f32 %v423, %v437
          %v444 = vadd.f32 %v424, %v437
          %v445 = vadd.f32 %v425, %v437
          %v446 = vadd.f32 %v426, %v437
          %v447 = vadd.f32 %v427, %v437
          %v448 = vadd.f32 %v428, %v437
          %v449 = vadd.f32 %v429, %v437
          %v450 = vadd.f32 %v430, %v437
          %v451 = vadd.f32 %v431, %v437
          %v452 = vadd.f32 %v432, %v437
          %v453 = vadd.f32 %v433, %v437
          %v454 = vadd.f32 %v434, %v437
          %v455 = vmul.f32 %v439, 30.0
          %v456 = vmul.f32 %v440, 30.0
          %v457 = vmul.f32 %v441, 30.0
          %v458 = vmul.f32 %v442, 30.0
          %v459 = vmul.f32 %v443, 30.0
          %v460 = vmul.f32 %v444, 30.0
          %v461 = vmul.f32 %v445, 30.0
          %v462 = vmul.f32 %v446, 30.0
          %v463 = vmul.f32 %v447, 30.0
          %v464 = vmul.f32 %v448, 30.0
          %v465 = vmul.f32 %v449, 30.0
          %v466 = vmul.f32 %v450, 30.0
          %v467 = vmul.f32 %v451, 30.0
          %v468 = vmul.f32 %v452, 30.0
          %v469 = vmul.f32 %v453, 30.0
          %v470 = vmul.f32 %v454, 30.0
          %v471 = vand.u32 2147483647, %v455
          %vm472 = vcmp.le.f32.partialorder %v471, 0.7853982
          %vm473 = vcmp.lt.s32.totalorder %v455, 0
          %v474 = vand.u32 %v455, 2139095040
          %v475 = vshrl.u32 %v474, 23
          %v476 = vsub.s32 %v475, 127
          %v477 = vand.u32 2147483647, %v455
          %v478 = vand.u32 %v477, 8388607
          %v479 = vor.u32 %v478, 8388608
          %v480 = vsub.s32 0, %v479
          %v481 = vadd.s32 %v476, 1
          %vm482 = vcmp.gt.s32.totalorder %v481, 0
          %v483 = vsel %vm482, %v481, 0
          %v484 = vshrl.u32 %v483, 5
          %v485 = vand.u32 %v483, 31
          %v486 = vsub.s32 32, %v485
          %v487 = vshrl.u32 683565275, %v486
          %v488 = vshll.u32 683565275, %v485
          %v489 = vshrl.u32 2475754826, %v486
          %v490 = vor.u32 %v488, %v489
          %v491 = vshll.u32 2475754826, %v485
          %v492 = vshrl.u32 2131351028, %v486
          %v493 = vor.u32 %v491, %v492
          %v494 = vshll.u32 2131351028, %v485
          %v495 = vshrl.u32 2102212464, %v486
          %v496 = vor.u32 %v494, %v495
          %v497 = vshll.u32 2102212464, %v485
          %v498 = vshrl.u32 920167782, %v486
          %v499 = vor.u32 %v497, %v498
          %v500 = vshll.u32 920167782, %v485
          %v501 = vshrl.u32 1326507024, %v486
          %v502 = vor.u32 %v500, %v501
          %vm503 = vcmp.lt.s32.totalorder %v484, 1
          %vm504 = vcmp.lt.s32.totalorder %v484, 2
          %vm505 = vcmp.lt.s32.totalorder %v484, 3
          %vm506 = vcmp.lt.s32.totalorder %v484, 4
          %v507 = vsel %vm503, %v487, %v490
          %v508 = vsel %vm506, %v496, 2102212464
          %v509 = vsel %vm505, %v493, %v508
          %v510 = vsel %vm504, %v507, %v509
          %v511 = vsel %vm503, %v490, %v493
          %v512 = vsel %vm506, %v499, 920167782
          %v513 = vsel %vm505, %v496, %v512
          %v514 = vsel %vm504, %v511, %v513
          %v515 = vsel %vm503, %v493, %v496
          %v516 = vsel %vm506, %v502, 1326507024
          %v517 = vsel %vm505, %v499, %v516
          %v518 = vsel %vm504, %v515, %v517
          %v519 = vshll.u32 %v479, 8
          %v520 = vand.u32 %v519, 65535
          %v521 = vshrl.u32 %v519, 16
          %v522 = vand.u32 %v518, 65535
          %v523 = vshrl.u32 %v518, 16
          %v524 = vmul.u32 %v520, %v522
          %v525 = vmul.u32 %v520, %v523
          %v526 = vmul.u32 %v521, %v522
          %v527 = vmul.u32 %v521, %v523
          %v528 = vshll.u32 %v525, 16
          %v529 = vshrl.u32 %v525, 16
          %v530 = vshll.u32 %v526, 16
          %v531 = vshrl.u32 %v526, 16
          %vm532 = vc.u32 %v524, %v528
          %v533 = vsel %vm532, 1, 0
          %v534 = vadd.s32 %v524, %v528
          %v535 = vadd.s32 %v527, %v533
          %vm536 = vc.u32 %v534, %v530
          %v537 = vsel %vm536, 1, 0
          %v538 = vadd.s32 %v534, %v530
          %v539 = vadd.s32 %v535, %v537
          %v540 = vadd.s32 %v539, %v529
          %v541 = vadd.s32 %v540, %v531
          %v542 = vand.u32 %v519, 65535
          %v543 = vshrl.u32 %v519, 16
          %v544 = vand.u32 %v514, 65535
          %v545 = vshrl.u32 %v514, 16
          %v546 = vmul.u32 %v542, %v544
          %v547 = vmul.u32 %v542, %v545
          %v548 = vmul.u32 %v543, %v544
          %v549 = vmul.u32 %v543, %v545
          %v550 = vshll.u32 %v547, 16
          %v551 = vshrl.u32 %v547, 16
          %v552 = vshll.u32 %v548, 16
          %v553 = vshrl.u32 %v548, 16
          %vm554 = vc.u32 %v546, %v550
          %v555 = vsel %vm554, 1, 0
          %v556 = vadd.s32 %v546, %v550
          %v557 = vadd.s32 %v549, %v555
          %vm558 = vc.u32 %v556, %v552
          %v559 = vsel %vm558, 1, 0
          %v560 = vadd.s32 %v556, %v552
          %v561 = vadd.s32 %v557, %v559
          %v562 = vadd.s32 %v561, %v551
          %v563 = vadd.s32 %v562, %v553
          %v564 = vmul.u32 %v519, %v510
          %v565 = vadd.s32 %v541, %v560
          %vm566 = vc.u32 %v541, %v560
          %v567 = vadd.s32 %v563, 1
          %v568 = vsel %vm566, %v567, %v563
          %v569 = vadd.s32 %v564, %v568
          %v570 = vadd.s32 %v569, 536870912
          %v571 = vshrl.u32 %v570, 30
          %v572 = vshll.u32 %v571, 30
          %v573 = vsub.s32 %v569, %v572
          %vm574 = vcmp.lt.s32.totalorder %v573, 0
          %v575 = vsub.s32 0, %v573
          %v576 = vsel %vm574, %v575, %v573
          %v577 = vclz %v576
          %v578 = vsub.s32 %v577, 2
          %vm579 = vcmp.gt.s32.totalorder 0, %v578
          %v580 = vsel %vm579, 0, %v578
          %v581 = vsub.s32 32, %v580
          %v582 = vshll.u32 %v573, %v580
          %v583 = vshrl.u32 %v565, %v581
          %v584 = vor.u32 %v582, %v583
          %v585 = vsub.s32 4294967266, %v580
          %v586 = vadd.s32 %v585, 127
          %v587 = vshll.u32 %v586, 23
          %v588 = vor.u32 4788187, %v587
          %v589 = vand.u32 2147483647, %v588
          %v591 = vcvt.s32.f32 %v584
          %v592 = vmul.f32 %v591, %v589
          %v593 = vxor.u32 %v592, 2147483648
          %v594 = vsel %vm473, %v593, %v592
          %v595 = vsub.s32 4, %v571
          %v596 = vsel %vm473, %v595, %v571
          %v597 = vsel %vm472, %v455, %v594
          %v598 = vsel %vm472, 0, %v596
          %v599 = vmul.f32 %v597, %v597
          %v600 = vmul.f32 %v599, -0.001358992
          %v601 = vadd.f32 %v600, 0.041655596
          %v602 = vmul.f32 %v599, %v601
          %v603 = vadd.f32 %v602, -0.4999988
          %v604 = vmul.f32 %v599, %v603
          %v605 = vadd.f32 1.0, %v604
          %v606 = vmul.f32 %v597, %v597
          %v607 = vmul.f32 %v606, -0.00019511016
          %v608 = vadd.f32 %v607, 0.008332121
          %v609 = vmul.f32 %v606, %v608
          %v610 = vadd.f32 %v609, -0.16666654
          %v611 = vmul.f32 %v606, %v610
          %v612 = vadd.f32 %v611, 1.0
          %v613 = vmul.f32 %v612, %v597
          %vm614 = vweird.f32 %v455
          %v615 = vadd.s32 %v598, 3
          %v616 = vand.u32 %v615, 3
          %vm617 = vcmp.lt.s32.totalorder %v616, 2
          %vm618 = vcmp.eq.s32.totalorder %v616, 0
          %v619 = vxor.u32 %v613, 2147483648
          %v620 = vsel %vm618, %v605, %v619
          %vm621 = vcmp.eq.s32.totalorder %v616, 2
          %v622 = vxor.u32 %v605, 2147483648
          %v623 = vsel %vm621, %v622, %v613
          %v624 = vsel %vm617, %v620, %v623
          %v625 = vsel %vm614, nan, %v624
          %v626 = vand.u32 2147483647, %v456
          %vm627 = vcmp.le.f32.partialorder %v626, 0.7853982
          %vm628 = vcmp.lt.s32.totalorder %v456, 0
          %v629 = vand.u32 %v456, 2139095040
          %v630 = vshrl.u32 %v629, 23
          %v631 = vsub.s32 %v630, 127
          %v632 = vand.u32 2147483647, %v456
          %v633 = vand.u32 %v632, 8388607
          %v634 = vor.u32 %v633, 8388608
          %v635 = vsub.s32 0, %v634
          %v636 = vadd.s32 %v631, 1
          %vm637 = vcmp.gt.s32.totalorder %v636, 0
          %v638 = vsel %vm637, %v636, 0
          %v639 = vshrl.u32 %v638, 5
          %v640 = vand.u32 %v638, 31
          %v641 = vsub.s32 32, %v640
          %v642 = vshrl.u32 683565275, %v641
          %v643 = vshll.u32 683565275, %v640
          %v644 = vshrl.u32 2475754826, %v641
          %v645 = vor.u32 %v643, %v644
          %v646 = vshll.u32 2475754826, %v640
          %v647 = vshrl.u32 2131351028, %v641
          %v648 = vor.u32 %v646, %v647
          %v649 = vshll.u32 2131351028, %v640
          %v650 = vshrl.u32 2102212464, %v641
          %v651 = vor.u32 %v649, %v650
          %v652 = vshll.u32 2102212464, %v640
          %v653 = vshrl.u32 920167782, %v641
          %v654 = vor.u32 %v652, %v653
          %v655 = vshll.u32 920167782, %v640
          %v656 = vshrl.u32 1326507024, %v641
          %v657 = vor.u32 %v655, %v656
          %vm658 = vcmp.lt.s32.totalorder %v639, 1
          %vm659 = vcmp.lt.s32.totalorder %v639, 2
          %vm660 = vcmp.lt.s32.totalorder %v639, 3
          %vm661 = vcmp.lt.s32.totalorder %v639, 4
          %v662 = vsel %vm658, %v642, %v645
          %v663 = vsel %vm661, %v651, 2102212464
          %v664 = vsel %vm660, %v648, %v663
          %v665 = vsel %vm659, %v662, %v664
          %v666 = vsel %vm658, %v645, %v648
          %v667 = vsel %vm661, %v654, 920167782
          %v668 = vsel %vm660, %v651, %v667
          %v669 = vsel %vm659, %v666, %v668
          %v670 = vsel %vm658, %v648, %v651
          %v671 = vsel %vm661, %v657, 1326507024
          %v672 = vsel %vm660, %v654, %v671
          %v673 = vsel %vm659, %v670, %v672
          %v674 = vshll.u32 %v634, 8
          %v675 = vand.u32 %v674, 65535
          %v676 = vshrl.u32 %v674, 16
          %v677 = vand.u32 %v673, 65535
          %v678 = vshrl.u32 %v673, 16
          %v679 = vmul.u32 %v675, %v677
          %v680 = vmul.u32 %v675, %v678
          %v681 = vmul.u32 %v676, %v677
          %v682 = vmul.u32 %v676, %v678
          %v683 = vshll.u32 %v680, 16
          %v684 = vshrl.u32 %v680, 16
          %v685 = vshll.u32 %v681, 16
          %v686 = vshrl.u32 %v681, 16
          %vm687 = vc.u32 %v679, %v683
          %v688 = vsel %vm687, 1, 0
          %v689 = vadd.s32 %v679, %v683
          %v690 = vadd.s32 %v682, %v688
          %vm691 = vc.u32 %v689, %v685
          %v692 = vsel %vm691, 1, 0
          %v693 = vadd.s32 %v689, %v685
          %v694 = vadd.s32 %v690, %v692
          %v695 = vadd.s32 %v694, %v684
          %v696 = vadd.s32 %v695, %v686
          %v697 = vand.u32 %v674, 65535
          %v698 = vshrl.u32 %v674, 16
          %v699 = vand.u32 %v669, 65535
          %v700 = vshrl.u32 %v669, 16
          %v701 = vmul.u32 %v697, %v699
          %v702 = vmul.u32 %v697, %v700
          %v703 = vmul.u32 %v698, %v699
          %v704 = vmul.u32 %v698, %v700
          %v705 = vshll.u32 %v702, 16
          %v706 = vshrl.u32 %v702, 16
          %v707 = vshll.u32 %v703, 16
          %v708 = vshrl.u32 %v703, 16
          %vm709 = vc.u32 %v701, %v705
          %v710 = vsel %vm709, 1, 0
          %v711 = vadd.s32 %v701, %v705
          %v712 = vadd.s32 %v704, %v710
          %vm713 = vc.u32 %v711, %v707
          %v714 = vsel %vm713, 1, 0
          %v715 = vadd.s32 %v711, %v707
          %v716 = vadd.s32 %v712, %v714
          %v717 = vadd.s32 %v716, %v706
          %v718 = vadd.s32 %v717, %v708
          %v719 = vmul.u32 %v674, %v665
          %v720 = vadd.s32 %v696, %v715
          %vm721 = vc.u32 %v696, %v715
          %v722 = vadd.s32 %v718, 1
          %v723 = vsel %vm721, %v722, %v718
          %v724 = vadd.s32 %v719, %v723
          %v725 = vadd.s32 %v724, 536870912
          %v726 = vshrl.u32 %v725, 30
          %v727 = vshll.u32 %v726, 30
          %v728 = vsub.s32 %v724, %v727
          %vm729 = vcmp.lt.s32.totalorder %v728, 0
          %v730 = vsub.s32 0, %v728
          %v731 = vsel %vm729, %v730, %v728
          %v732 = vclz %v731
          %v733 = vsub.s32 %v732, 2
          %vm734 = vcmp.gt.s32.totalorder 0, %v733
          %v735 = vsel %vm734, 0, %v733
          %v736 = vsub.s32 32, %v735
          %v737 = vshll.u32 %v728, %v735
          %v738 = vshrl.u32 %v720, %v736
          %v739 = vor.u32 %v737, %v738
          %v740 = vsub.s32 4294967266, %v735
          %v741 = vadd.s32 %v740, 127
          %v742 = vshll.u32 %v741, 23
          %v743 = vor.u32 4788187, %v742
          %v744 = vand.u32 2147483647, %v743
          %v746 = vcvt.s32.f32 %v739
          %v747 = vmul.f32 %v746, %v744
          %v748 = vxor.u32 %v747, 2147483648
          %v749 = vsel %vm628, %v748, %v747
          %v750 = vsub.s32 4, %v726
          %v751 = vsel %vm628, %v750, %v726
          %v752 = vsel %vm627, %v456, %v749
          %v753 = vsel %vm627, 0, %v751
          %v754 = vmul.f32 %v752, %v752
          %v755 = vmul.f32 %v754, -0.001358992
          %v756 = vadd.f32 %v755, 0.041655596
          %v757 = vmul.f32 %v754, %v756
          %v758 = vadd.f32 %v757, -0.4999988
          %v759 = vmul.f32 %v754, %v758
          %v760 = vadd.f32 1.0, %v759
          %v761 = vmul.f32 %v752, %v752
          %v762 = vmul.f32 %v761, -0.00019511016
          %v763 = vadd.f32 %v762, 0.008332121
          %v764 = vmul.f32 %v761, %v763
          %v765 = vadd.f32 %v764, -0.16666654
          %v766 = vmul.f32 %v761, %v765
          %v767 = vadd.f32 %v766, 1.0
          %v768 = vmul.f32 %v767, %v752
          %vm769 = vweird.f32 %v456
          %v770 = vadd.s32 %v753, 3
          %v771 = vand.u32 %v770, 3
          %vm772 = vcmp.lt.s32.totalorder %v771, 2
          %vm773 = vcmp.eq.s32.totalorder %v771, 0
          %v774 = vxor.u32 %v768, 2147483648
          %v775 = vsel %vm773, %v760, %v774
          %vm776 = vcmp.eq.s32.totalorder %v771, 2
          %v777 = vxor.u32 %v760, 2147483648
          %v778 = vsel %vm776, %v777, %v768
          %v779 = vsel %vm772, %v775, %v778
          %v780 = vsel %vm769, nan, %v779
          %v781 = vand.u32 2147483647, %v457
          %vm782 = vcmp.le.f32.partialorder %v781, 0.7853982
          %vm783 = vcmp.lt.s32.totalorder %v457, 0
          %v784 = vand.u32 %v457, 2139095040
          %v785 = vshrl.u32 %v784, 23
          %v786 = vsub.s32 %v785, 127
          %v787 = vand.u32 2147483647, %v457
          %v788 = vand.u32 %v787, 8388607
          %v789 = vor.u32 %v788, 8388608
          %v790 = vsub.s32 0, %v789
          %v791 = vadd.s32 %v786, 1
          %vm792 = vcmp.gt.s32.totalorder %v791, 0
          %v793 = vsel %vm792, %v791, 0
          %v794 = vshrl.u32 %v793, 5
          %v795 = vand.u32 %v793, 31
          %v796 = vsub.s32 32, %v795
          %v797 = vshrl.u32 683565275, %v796
          %v798 = vshll.u32 683565275, %v795
          %v799 = vshrl.u32 2475754826, %v796
          %v800 = vor.u32 %v798, %v799
          %v801 = vshll.u32 2475754826, %v795
          %v802 = vshrl.u32 2131351028, %v796
          %v803 = vor.u32 %v801, %v802
          %v804 = vshll.u32 2131351028, %v795
          %v805 = vshrl.u32 2102212464, %v796
          %v806 = vor.u32 %v804, %v805
          %v807 = vshll.u32 2102212464, %v795
          %v808 = vshrl.u32 920167782, %v796
          %v809 = vor.u32 %v807, %v808
          %v810 = vshll.u32 920167782, %v795
          %v811 = vshrl.u32 1326507024, %v796
          %v812 = vor.u32 %v810, %v811
          %vm813 = vcmp.lt.s32.totalorder %v794, 1
          %vm814 = vcmp.lt.s32.totalorder %v794, 2
          %vm815 = vcmp.lt.s32.totalorder %v794, 3
          %vm816 = vcmp.lt.s32.totalorder %v794, 4
          %v817 = vsel %vm813, %v797, %v800
          %v818 = vsel %vm816, %v806, 2102212464
          %v819 = vsel %vm815, %v803, %v818
          %v820 = vsel %vm814, %v817, %v819
          %v821 = vsel %vm813, %v800, %v803
          %v822 = vsel %vm816, %v809, 920167782
          %v823 = vsel %vm815, %v806, %v822
          %v824 = vsel %vm814, %v821, %v823
          %v825 = vsel %vm813, %v803, %v806
          %v826 = vsel %vm816, %v812, 1326507024
          %v827 = vsel %vm815, %v809, %v826
          %v828 = vsel %vm814, %v825, %v827
          %v829 = vshll.u32 %v789, 8
          %v830 = vand.u32 %v829, 65535
          %v831 = vshrl.u32 %v829, 16
          %v832 = vand.u32 %v828, 65535
          %v833 = vshrl.u32 %v828, 16
          %v834 = vmul.u32 %v830, %v832
          %v835 = vmul.u32 %v830, %v833
          %v836 = vmul.u32 %v831, %v832
          %v837 = vmul.u32 %v831, %v833
          %v838 = vshll.u32 %v835, 16
          %v839 = vshrl.u32 %v835, 16
          %v840 = vshll.u32 %v836, 16
          %v841 = vshrl.u32 %v836, 16
          %vm842 = vc.u32 %v834, %v838
          %v843 = vsel %vm842, 1, 0
          %v844 = vadd.s32 %v834, %v838
          %v845 = vadd.s32 %v837, %v843
          %vm846 = vc.u32 %v844, %v840
          %v847 = vsel %vm846, 1, 0
          %v848 = vadd.s32 %v844, %v840
          %v849 = vadd.s32 %v845, %v847
          %v850 = vadd.s32 %v849, %v839
          %v851 = vadd.s32 %v850, %v841
          %v852 = vand.u32 %v829, 65535
          %v853 = vshrl.u32 %v829, 16
          %v854 = vand.u32 %v824, 65535
          %v855 = vshrl.u32 %v824, 16
          %v856 = vmul.u32 %v852, %v854
          %v857 = vmul.u32 %v852, %v855
          %v858 = vmul.u32 %v853, %v854
          %v859 = vmul.u32 %v853, %v855
          %v860 = vshll.u32 %v857, 16
          %v861 = vshrl.u32 %v857, 16
          %v862 = vshll.u32 %v858, 16
          %v863 = vshrl.u32 %v858, 16
          %vm864 = vc.u32 %v856, %v860
          %v865 = vsel %vm864, 1, 0
          %v866 = vadd.s32 %v856, %v860
          %v867 = vadd.s32 %v859, %v865
          %vm868 = vc.u32 %v866, %v862
          %v869 = vsel %vm868, 1, 0
          %v870 = vadd.s32 %v866, %v862
          %v871 = vadd.s32 %v867, %v869
          %v872 = vadd.s32 %v871, %v861
          %v873 = vadd.s32 %v872, %v863
          %v874 = vmul.u32 %v829, %v820
          %v875 = vadd.s32 %v851, %v870
          %vm876 = vc.u32 %v851, %v870
          %v877 = vadd.s32 %v873, 1
          %v878 = vsel %vm876, %v877, %v873
          %v879 = vadd.s32 %v874, %v878
          %v880 = vadd.s32 %v879, 536870912
          %v881 = vshrl.u32 %v880, 30
          %v882 = vshll.u32 %v881, 30
          %v883 = vsub.s32 %v879, %v882
          %vm884 = vcmp.lt.s32.totalorder %v883, 0
          %v885 = vsub.s32 0, %v883
          %v886 = vsel %vm884, %v885, %v883
          %v887 = vclz %v886
          %v888 = vsub.s32 %v887, 2
          %vm889 = vcmp.gt.s32.totalorder 0, %v888
          %v890 = vsel %vm889, 0, %v888
          %v891 = vsub.s32 32, %v890
          %v892 = vshll.u32 %v883, %v890
          %v893 = vshrl.u32 %v875, %v891
          %v894 = vor.u32 %v892, %v893
          %v895 = vsub.s32 4294967266, %v890
          %v896 = vadd.s32 %v895, 127
          %v897 = vshll.u32 %v896, 23
          %v898 = vor.u32 4788187, %v897
          %v899 = vand.u32 2147483647, %v898
          %v901 = vcvt.s32.f32 %v894
          %v902 = vmul.f32 %v901, %v899
          %v903 = vxor.u32 %v902, 2147483648
          %v904 = vsel %vm783, %v903, %v902
          %v905 = vsub.s32 4, %v881
          %v906 = vsel %vm783, %v905, %v881
          %v907 = vsel %vm782, %v457, %v904
          %v908 = vsel %vm782, 0, %v906
          %v909 = vmul.f32 %v907, %v907
          %v910 = vmul.f32 %v909, -0.001358992
          %v911 = vadd.f32 %v910, 0.041655596
          %v912 = vmul.f32 %v909, %v911
          %v913 = vadd.f32 %v912, -0.4999988
          %v914 = vmul.f32 %v909, %v913
          %v915 = vadd.f32 1.0, %v914
          %v916 = vmul.f32 %v907, %v907
          %v917 = vmul.f32 %v916, -0.00019511016
          %v918 = vadd.f32 %v917, 0.008332121
          %v919 = vmul.f32 %v916, %v918
          %v920 = vadd.f32 %v919, -0.16666654
          %v921 = vmul.f32 %v916, %v920
          %v922 = vadd.f32 %v921, 1.0
          %v923 = vmul.f32 %v922, %v907
          %vm924 = vweird.f32 %v457
          %v925 = vadd.s32 %v908, 3
          %v926 = vand.u32 %v925, 3
          %vm927 = vcmp.lt.s32.totalorder %v926, 2
          %vm928 = vcmp.eq.s32.totalorder %v926, 0
          %v929 = vxor.u32 %v923, 2147483648
          %v930 = vsel %vm928, %v915, %v929
          %vm931 = vcmp.eq.s32.totalorder %v926, 2
          %v932 = vxor.u32 %v915, 2147483648
          %v933 = vsel %vm931, %v932, %v923
          %v934 = vsel %vm927, %v930, %v933
          %v935 = vsel %vm924, nan, %v934
          %v936 = vand.u32 2147483647, %v458
          %vm937 = vcmp.le.f32.partialorder %v936, 0.7853982
          %vm938 = vcmp.lt.s32.totalorder %v458, 0
          %v939 = vand.u32 %v458, 2139095040
          %v940 = vshrl.u32 %v939, 23
          %v941 = vsub.s32 %v940, 127
          %v942 = vand.u32 2147483647, %v458
          %v943 = vand.u32 %v942, 8388607
          %v944 = vor.u32 %v943, 8388608
          %v945 = vsub.s32 0, %v944
          %v946 = vadd.s32 %v941, 1
          %vm947 = vcmp.gt.s32.totalorder %v946, 0
          %v948 = vsel %vm947, %v946, 0
          %v949 = vshrl.u32 %v948, 5
          %v950 = vand.u32 %v948, 31
          %v951 = vsub.s32 32, %v950
          %v952 = vshrl.u32 683565275, %v951
          %v953 = vshll.u32 683565275, %v950
          %v954 = vshrl.u32 2475754826, %v951
          %v955 = vor.u32 %v953, %v954
          %v956 = vshll.u32 2475754826, %v950
          %v957 = vshrl.u32 2131351028, %v951
          %v958 = vor.u32 %v956, %v957
          %v959 = vshll.u32 2131351028, %v950
          %v960 = vshrl.u32 2102212464, %v951
          %v961 = vor.u32 %v959, %v960
          %v962 = vshll.u32 2102212464, %v950
          %v963 = vshrl.u32 920167782, %v951
          %v964 = vor.u32 %v962, %v963
          %v965 = vshll.u32 920167782, %v950
          %v966 = vshrl.u32 1326507024, %v951
          %v967 = vor.u32 %v965, %v966
          %vm968 = vcmp.lt.s32.totalorder %v949, 1
          %vm969 = vcmp.lt.s32.totalorder %v949, 2
          %vm970 = vcmp.lt.s32.totalorder %v949, 3
          %vm971 = vcmp.lt.s32.totalorder %v949, 4
          %v972 = vsel %vm968, %v952, %v955
          %v973 = vsel %vm971, %v961, 2102212464
          %v974 = vsel %vm970, %v958, %v973
          %v975 = vsel %vm969, %v972, %v974
          %v976 = vsel %vm968, %v955, %v958
          %v977 = vsel %vm971, %v964, 920167782
          %v978 = vsel %vm970, %v961, %v977
          %v979 = vsel %vm969, %v976, %v978
          %v980 = vsel %vm968, %v958, %v961
          %v981 = vsel %vm971, %v967, 1326507024
          %v982 = vsel %vm970, %v964, %v981
          %v983 = vsel %vm969, %v980, %v982
          %v984 = vshll.u32 %v944, 8
          %v985 = vand.u32 %v984, 65535
          %v986 = vshrl.u32 %v984, 16
          %v987 = vand.u32 %v983, 65535
          %v988 = vshrl.u32 %v983, 16
          %v989 = vmul.u32 %v985, %v987
          %v990 = vmul.u32 %v985, %v988
          %v991 = vmul.u32 %v986, %v987
          %v992 = vmul.u32 %v986, %v988
          %v993 = vshll.u32 %v990, 16
          %v994 = vshrl.u32 %v990, 16
          %v995 = vshll.u32 %v991, 16
          %v996 = vshrl.u32 %v991, 16
          %vm997 = vc.u32 %v989, %v993
          %v998 = vsel %vm997, 1, 0
          %v999 = vadd.s32 %v989, %v993
          %v1000 = vadd.s32 %v992, %v998
          %vm1001 = vc.u32 %v999, %v995
          %v1002 = vsel %vm1001, 1, 0
          %v1003 = vadd.s32 %v999, %v995
          %v1004 = vadd.s32 %v1000, %v1002
          %v1005 = vadd.s32 %v1004, %v994
          %v1006 = vadd.s32 %v1005, %v996
          %v1007 = vand.u32 %v984, 65535
          %v1008 = vshrl.u32 %v984, 16
          %v1009 = vand.u32 %v979, 65535
          %v1010 = vshrl.u32 %v979, 16
          %v1011 = vmul.u32 %v1007, %v1009
          %v1012 = vmul.u32 %v1007, %v1010
          %v1013 = vmul.u32 %v1008, %v1009
          %v1014 = vmul.u32 %v1008, %v1010
          %v1015 = vshll.u32 %v1012, 16
          %v1016 = vshrl.u32 %v1012, 16
          %v1017 = vshll.u32 %v1013, 16
          %v1018 = vshrl.u32 %v1013, 16
          %vm1019 = vc.u32 %v1011, %v1015
          %v1020 = vsel %vm1019, 1, 0
          %v1021 = vadd.s32 %v1011, %v1015
          %v1022 = vadd.s32 %v1014, %v1020
          %vm1023 = vc.u32 %v1021, %v1017
          %v1024 = vsel %vm1023, 1, 0
          %v1025 = vadd.s32 %v1021, %v1017
          %v1026 = vadd.s32 %v1022, %v1024
          %v1027 = vadd.s32 %v1026, %v1016
          %v1028 = vadd.s32 %v1027, %v1018
          %v1029 = vmul.u32 %v984, %v975
          %v1030 = vadd.s32 %v1006, %v1025
          %vm1031 = vc.u32 %v1006, %v1025
          %v1032 = vadd.s32 %v1028, 1
          %v1033 = vsel %vm1031, %v1032, %v1028
          %v1034 = vadd.s32 %v1029, %v1033
          %v1035 = vadd.s32 %v1034, 536870912
          %v1036 = vshrl.u32 %v1035, 30
          %v1037 = vshll.u32 %v1036, 30
          %v1038 = vsub.s32 %v1034, %v1037
          %vm1039 = vcmp.lt.s32.totalorder %v1038, 0
          %v1040 = vsub.s32 0, %v1038
          %v1041 = vsel %vm1039, %v1040, %v1038
          %v1042 = vclz %v1041
          %v1043 = vsub.s32 %v1042, 2
          %vm1044 = vcmp.gt.s32.totalorder 0, %v1043
          %v1045 = vsel %vm1044, 0, %v1043
          %v1046 = vsub.s32 32, %v1045
          %v1047 = vshll.u32 %v1038, %v1045
          %v1048 = vshrl.u32 %v1030, %v1046
          %v1049 = vor.u32 %v1047, %v1048
          %v1050 = vsub.s32 4294967266, %v1045
          %v1051 = vadd.s32 %v1050, 127
          %v1052 = vshll.u32 %v1051, 23
          %v1053 = vor.u32 4788187, %v1052
          %v1054 = vand.u32 2147483647, %v1053
          %v1056 = vcvt.s32.f32 %v1049
          %v1057 = vmul.f32 %v1056, %v1054
          %v1058 = vxor.u32 %v1057, 2147483648
          %v1059 = vsel %vm938, %v1058, %v1057
          %v1060 = vsub.s32 4, %v1036
          %v1061 = vsel %vm938, %v1060, %v1036
          %v1062 = vsel %vm937, %v458, %v1059
          %v1063 = vsel %vm937, 0, %v1061
          %v1064 = vmul.f32 %v1062, %v1062
          %v1065 = vmul.f32 %v1064, -0.001358992
          %v1066 = vadd.f32 %v1065, 0.041655596
          %v1067 = vmul.f32 %v1064, %v1066
          %v1068 = vadd.f32 %v1067, -0.4999988
          %v1069 = vmul.f32 %v1064, %v1068
          %v1070 = vadd.f32 1.0, %v1069
          %v1071 = vmul.f32 %v1062, %v1062
          %v1072 = vmul.f32 %v1071, -0.00019511016
          %v1073 = vadd.f32 %v1072, 0.008332121
          %v1074 = vmul.f32 %v1071, %v1073
          %v1075 = vadd.f32 %v1074, -0.16666654
          %v1076 = vmul.f32 %v1071, %v1075
          %v1077 = vadd.f32 %v1076, 1.0
          %v1078 = vmul.f32 %v1077, %v1062
          %vm1079 = vweird.f32 %v458
          %v1080 = vadd.s32 %v1063, 3
          %v1081 = vand.u32 %v1080, 3
          %vm1082 = vcmp.lt.s32.totalorder %v1081, 2
          %vm1083 = vcmp.eq.s32.totalorder %v1081, 0
          %v1084 = vxor.u32 %v1078, 2147483648
          %v1085 = vsel %vm1083, %v1070, %v1084
          %vm1086 = vcmp.eq.s32.totalorder %v1081, 2
          %v1087 = vxor.u32 %v1070, 2147483648
          %v1088 = vsel %vm1086, %v1087, %v1078
          %v1089 = vsel %vm1082, %v1085, %v1088
          %v1090 = vsel %vm1079, nan, %v1089
          %v1091 = vand.u32 2147483647, %v459
          %vm1092 = vcmp.le.f32.partialorder %v1091, 0.7853982
          %vm1093 = vcmp.lt.s32.totalorder %v459, 0
          %v1094 = vand.u32 %v459, 2139095040
          %v1095 = vshrl.u32 %v1094, 23
          %v1096 = vsub.s32 %v1095, 127
          %v1097 = vand.u32 2147483647, %v459
          %v1098 = vand.u32 %v1097, 8388607
          %v1099 = vor.u32 %v1098, 8388608
          %v1100 = vsub.s32 0, %v1099
          %v1101 = vadd.s32 %v1096, 1
          %vm1102 = vcmp.gt.s32.totalorder %v1101, 0
          %v1103 = vsel %vm1102, %v1101, 0
          %v1104 = vshrl.u32 %v1103, 5
          %v1105 = vand.u32 %v1103, 31
          %v1106 = vsub.s32 32, %v1105
          %v1107 = vshrl.u32 683565275, %v1106
          %v1108 = vshll.u32 683565275, %v1105
          %v1109 = vshrl.u32 2475754826, %v1106
          %v1110 = vor.u32 %v1108, %v1109
          %v1111 = vshll.u32 2475754826, %v1105
          %v1112 = vshrl.u32 2131351028, %v1106
          %v1113 = vor.u32 %v1111, %v1112
          %v1114 = vshll.u32 2131351028, %v1105
          %v1115 = vshrl.u32 2102212464, %v1106
          %v1116 = vor.u32 %v1114, %v1115
          %v1117 = vshll.u32 2102212464, %v1105
          %v1118 = vshrl.u32 920167782, %v1106
          %v1119 = vor.u32 %v1117, %v1118
          %v1120 = vshll.u32 920167782, %v1105
          %v1121 = vshrl.u32 1326507024, %v1106
          %v1122 = vor.u32 %v1120, %v1121
          %vm1123 = vcmp.lt.s32.totalorder %v1104, 1
          %vm1124 = vcmp.lt.s32.totalorder %v1104, 2
          %vm1125 = vcmp.lt.s32.totalorder %v1104, 3
          %vm1126 = vcmp.lt.s32.totalorder %v1104, 4
          %v1127 = vsel %vm1123, %v1107, %v1110
          %v1128 = vsel %vm1126, %v1116, 2102212464
          %v1129 = vsel %vm1125, %v1113, %v1128
          %v1130 = vsel %vm1124, %v1127, %v1129
          %v1131 = vsel %vm1123, %v1110, %v1113
          %v1132 = vsel %vm1126, %v1119, 920167782
          %v1133 = vsel %vm1125, %v1116, %v1132
          %v1134 = vsel %vm1124, %v1131, %v1133
          %v1135 = vsel %vm1123, %v1113, %v1116
          %v1136 = vsel %vm1126, %v1122, 1326507024
          %v1137 = vsel %vm1125, %v1119, %v1136
          %v1138 = vsel %vm1124, %v1135, %v1137
          %v1139 = vshll.u32 %v1099, 8
          %v1140 = vand.u32 %v1139, 65535
          %v1141 = vshrl.u32 %v1139, 16
          %v1142 = vand.u32 %v1138, 65535
          %v1143 = vshrl.u32 %v1138, 16
          %v1144 = vmul.u32 %v1140, %v1142
          %v1145 = vmul.u32 %v1140, %v1143
          %v1146 = vmul.u32 %v1141, %v1142
          %v1147 = vmul.u32 %v1141, %v1143
          %v1148 = vshll.u32 %v1145, 16
          %v1149 = vshrl.u32 %v1145, 16
          %v1150 = vshll.u32 %v1146, 16
          %v1151 = vshrl.u32 %v1146, 16
          %vm1152 = vc.u32 %v1144, %v1148
          %v1153 = vsel %vm1152, 1, 0
          %v1154 = vadd.s32 %v1144, %v1148
          %v1155 = vadd.s32 %v1147, %v1153
          %vm1156 = vc.u32 %v1154, %v1150
          %v1157 = vsel %vm1156, 1, 0
          %v1158 = vadd.s32 %v1154, %v1150
          %v1159 = vadd.s32 %v1155, %v1157
          %v1160 = vadd.s32 %v1159, %v1149
          %v1161 = vadd.s32 %v1160, %v1151
          %v1162 = vand.u32 %v1139, 65535
          %v1163 = vshrl.u32 %v1139, 16
          %v1164 = vand.u32 %v1134, 65535
          %v1165 = vshrl.u32 %v1134, 16
          %v1166 = vmul.u32 %v1162, %v1164
          %v1167 = vmul.u32 %v1162, %v1165
          %v1168 = vmul.u32 %v1163, %v1164
          %v1169 = vmul.u32 %v1163, %v1165
          %v1170 = vshll.u32 %v1167, 16
          %v1171 = vshrl.u32 %v1167, 16
          %v1172 = vshll.u32 %v1168, 16
          %v1173 = vshrl.u32 %v1168, 16
          %vm1174 = vc.u32 %v1166, %v1170
          %v1175 = vsel %vm1174, 1, 0
          %v1176 = vadd.s32 %v1166, %v1170
          %v1177 = vadd.s32 %v1169, %v1175
          %vm1178 = vc.u32 %v1176, %v1172
          %v1179 = vsel %vm1178, 1, 0
          %v1180 = vadd.s32 %v1176, %v1172
          %v1181 = vadd.s32 %v1177, %v1179
          %v1182 = vadd.s32 %v1181, %v1171
          %v1183 = vadd.s32 %v1182, %v1173
          %v1184 = vmul.u32 %v1139, %v1130
          %v1185 = vadd.s32 %v1161, %v1180
          %vm1186 = vc.u32 %v1161, %v1180
          %v1187 = vadd.s32 %v1183, 1
          %v1188 = vsel %vm1186, %v1187, %v1183
          %v1189 = vadd.s32 %v1184, %v1188
          %v1190 = vadd.s32 %v1189, 536870912
          %v1191 = vshrl.u32 %v1190, 30
          %v1192 = vshll.u32 %v1191, 30
          %v1193 = vsub.s32 %v1189, %v1192
          %vm1194 = vcmp.lt.s32.totalorder %v1193, 0
          %v1195 = vsub.s32 0, %v1193
          %v1196 = vsel %vm1194, %v1195, %v1193
          %v1197 = vclz %v1196
          %v1198 = vsub.s32 %v1197, 2
          %vm1199 = vcmp.gt.s32.totalorder 0, %v1198
          %v1200 = vsel %vm1199, 0, %v1198
          %v1201 = vsub.s32 32, %v1200
          %v1202 = vshll.u32 %v1193, %v1200
          %v1203 = vshrl.u32 %v1185, %v1201
          %v1204 = vor.u32 %v1202, %v1203
          %v1205 = vsub.s32 4294967266, %v1200
          %v1206 = vadd.s32 %v1205, 127
          %v1207 = vshll.u32 %v1206, 23
          %v1208 = vor.u32 4788187, %v1207
          %v1209 = vand.u32 2147483647, %v1208
          %v1211 = vcvt.s32.f32 %v1204
          %v1212 = vmul.f32 %v1211, %v1209
          %v1213 = vxor.u32 %v1212, 2147483648
          %v1214 = vsel %vm1093, %v1213, %v1212
          %v1215 = vsub.s32 4, %v1191
          %v1216 = vsel %vm1093, %v1215, %v1191
          %v1217 = vsel %vm1092, %v459, %v1214
          %v1218 = vsel %vm1092, 0, %v1216
          %v1219 = vmul.f32 %v1217, %v1217
          %v1220 = vmul.f32 %v1219, -0.001358992
          %v1221 = vadd.f32 %v1220, 0.041655596
          %v1222 = vmul.f32 %v1219, %v1221
          %v1223 = vadd.f32 %v1222, -0.4999988
          %v1224 = vmul.f32 %v1219, %v1223
          %v1225 = vadd.f32 1.0, %v1224
          %v1226 = vmul.f32 %v1217, %v1217
          %v1227 = vmul.f32 %v1226, -0.00019511016
          %v1228 = vadd.f32 %v1227, 0.008332121
          %v1229 = vmul.f32 %v1226, %v1228
          %v1230 = vadd.f32 %v1229, -0.16666654
          %v1231 = vmul.f32 %v1226, %v1230
          %v1232 = vadd.f32 %v1231, 1.0
          %v1233 = vmul.f32 %v1232, %v1217
          %vm1234 = vweird.f32 %v459
          %v1235 = vadd.s32 %v1218, 3
          %v1236 = vand.u32 %v1235, 3
          %vm1237 = vcmp.lt.s32.totalorder %v1236, 2
          %vm1238 = vcmp.eq.s32.totalorder %v1236, 0
          %v1239 = vxor.u32 %v1233, 2147483648
          %v1240 = vsel %vm1238, %v1225, %v1239
          %vm1241 = vcmp.eq.s32.totalorder %v1236, 2
          %v1242 = vxor.u32 %v1225, 2147483648
          %v1243 = vsel %vm1241, %v1242, %v1233
          %v1244 = vsel %vm1237, %v1240, %v1243
          %v1245 = vsel %vm1234, nan, %v1244
          %v1246 = vand.u32 2147483647, %v460
          %vm1247 = vcmp.le.f32.partialorder %v1246, 0.7853982
          %vm1248 = vcmp.lt.s32.totalorder %v460, 0
          %v1249 = vand.u32 %v460, 2139095040
          %v1250 = vshrl.u32 %v1249, 23
          %v1251 = vsub.s32 %v1250, 127
          %v1252 = vand.u32 2147483647, %v460
          %v1253 = vand.u32 %v1252, 8388607
          %v1254 = vor.u32 %v1253, 8388608
          %v1255 = vsub.s32 0, %v1254
          %v1256 = vadd.s32 %v1251, 1
          %vm1257 = vcmp.gt.s32.totalorder %v1256, 0
          %v1258 = vsel %vm1257, %v1256, 0
          %v1259 = vshrl.u32 %v1258, 5
          %v1260 = vand.u32 %v1258, 31
          %v1261 = vsub.s32 32, %v1260
          %v1262 = vshrl.u32 683565275, %v1261
          %v1263 = vshll.u32 683565275, %v1260
          %v1264 = vshrl.u32 2475754826, %v1261
          %v1265 = vor.u32 %v1263, %v1264
          %v1266 = vshll.u32 2475754826, %v1260
          %v1267 = vshrl.u32 2131351028, %v1261
          %v1268 = vor.u32 %v1266, %v1267
          %v1269 = vshll.u32 2131351028, %v1260
          %v1270 = vshrl.u32 2102212464, %v1261
          %v1271 = vor.u32 %v1269, %v1270
          %v1272 = vshll.u32 2102212464, %v1260
          %v1273 = vshrl.u32 920167782, %v1261
          %v1274 = vor.u32 %v1272, %v1273
          %v1275 = vshll.u32 920167782, %v1260
          %v1276 = vshrl.u32 1326507024, %v1261
          %v1277 = vor.u32 %v1275, %v1276
          %vm1278 = vcmp.lt.s32.totalorder %v1259, 1
          %vm1279 = vcmp.lt.s32.totalorder %v1259, 2
          %vm1280 = vcmp.lt.s32.totalorder %v1259, 3
          %vm1281 = vcmp.lt.s32.totalorder %v1259, 4
          %v1282 = vsel %vm1278, %v1262, %v1265
          %v1283 = vsel %vm1281, %v1271, 2102212464
          %v1284 = vsel %vm1280, %v1268, %v1283
          %v1285 = vsel %vm1279, %v1282, %v1284
          %v1286 = vsel %vm1278, %v1265, %v1268
          %v1287 = vsel %vm1281, %v1274, 920167782
          %v1288 = vsel %vm1280, %v1271, %v1287
          %v1289 = vsel %vm1279, %v1286, %v1288
          %v1290 = vsel %vm1278, %v1268, %v1271
          %v1291 = vsel %vm1281, %v1277, 1326507024
          %v1292 = vsel %vm1280, %v1274, %v1291
          %v1293 = vsel %vm1279, %v1290, %v1292
          %v1294 = vshll.u32 %v1254, 8
          %v1295 = vand.u32 %v1294, 65535
          %v1296 = vshrl.u32 %v1294, 16
          %v1297 = vand.u32 %v1293, 65535
          %v1298 = vshrl.u32 %v1293, 16
          %v1299 = vmul.u32 %v1295, %v1297
          %v1300 = vmul.u32 %v1295, %v1298
          %v1301 = vmul.u32 %v1296, %v1297
          %v1302 = vmul.u32 %v1296, %v1298
          %v1303 = vshll.u32 %v1300, 16
          %v1304 = vshrl.u32 %v1300, 16
          %v1305 = vshll.u32 %v1301, 16
          %v1306 = vshrl.u32 %v1301, 16
          %vm1307 = vc.u32 %v1299, %v1303
          %v1308 = vsel %vm1307, 1, 0
          %v1309 = vadd.s32 %v1299, %v1303
          %v1310 = vadd.s32 %v1302, %v1308
          %vm1311 = vc.u32 %v1309, %v1305
          %v1312 = vsel %vm1311, 1, 0
          %v1313 = vadd.s32 %v1309, %v1305
          %v1314 = vadd.s32 %v1310, %v1312
          %v1315 = vadd.s32 %v1314, %v1304
          %v1316 = vadd.s32 %v1315, %v1306
          %v1317 = vand.u32 %v1294, 65535
          %v1318 = vshrl.u32 %v1294, 16
          %v1319 = vand.u32 %v1289, 65535
          %v1320 = vshrl.u32 %v1289, 16
          %v1321 = vmul.u32 %v1317, %v1319
          %v1322 = vmul.u32 %v1317, %v1320
          %v1323 = vmul.u32 %v1318, %v1319
          %v1324 = vmul.u32 %v1318, %v1320
          %v1325 = vshll.u32 %v1322, 16
          %v1326 = vshrl.u32 %v1322, 16
          %v1327 = vshll.u32 %v1323, 16
          %v1328 = vshrl.u32 %v1323, 16
          %vm1329 = vc.u32 %v1321, %v1325
          %v1330 = vsel %vm1329, 1, 0
          %v1331 = vadd.s32 %v1321, %v1325
          %v1332 = vadd.s32 %v1324, %v1330
          %vm1333 = vc.u32 %v1331, %v1327
          %v1334 = vsel %vm1333, 1, 0
          %v1335 = vadd.s32 %v1331, %v1327
          %v1336 = vadd.s32 %v1332, %v1334
          %v1337 = vadd.s32 %v1336, %v1326
          %v1338 = vadd.s32 %v1337, %v1328
          %v1339 = vmul.u32 %v1294, %v1285
          %v1340 = vadd.s32 %v1316, %v1335
          %vm1341 = vc.u32 %v1316, %v1335
          %v1342 = vadd.s32 %v1338, 1
          %v1343 = vsel %vm1341, %v1342, %v1338
          %v1344 = vadd.s32 %v1339, %v1343
          %v1345 = vadd.s32 %v1344, 536870912
          %v1346 = vshrl.u32 %v1345, 30
          %v1347 = vshll.u32 %v1346, 30
          %v1348 = vsub.s32 %v1344, %v1347
          %vm1349 = vcmp.lt.s32.totalorder %v1348, 0
          %v1350 = vsub.s32 0, %v1348
          %v1351 = vsel %vm1349, %v1350, %v1348
          %v1352 = vclz %v1351
          %v1353 = vsub.s32 %v1352, 2
          %vm1354 = vcmp.gt.s32.totalorder 0, %v1353
          %v1355 = vsel %vm1354, 0, %v1353
          %v1356 = vsub.s32 32, %v1355
          %v1357 = vshll.u32 %v1348, %v1355
          %v1358 = vshrl.u32 %v1340, %v1356
          %v1359 = vor.u32 %v1357, %v1358
          %v1360 = vsub.s32 4294967266, %v1355
          %v1361 = vadd.s32 %v1360, 127
          %v1362 = vshll.u32 %v1361, 23
          %v1363 = vor.u32 4788187, %v1362
          %v1364 = vand.u32 2147483647, %v1363
          %v1366 = vcvt.s32.f32 %v1359
          %v1367 = vmul.f32 %v1366, %v1364
          %v1368 = vxor.u32 %v1367, 2147483648
          %v1369 = vsel %vm1248, %v1368, %v1367
          %v1370 = vsub.s32 4, %v1346
          %v1371 = vsel %vm1248, %v1370, %v1346
          %v1372 = vsel %vm1247, %v460, %v1369
          %v1373 = vsel %vm1247, 0, %v1371
          %v1374 = vmul.f32 %v1372, %v1372
          %v1375 = vmul.f32 %v1374, -0.001358992
          %v1376 = vadd.f32 %v1375, 0.041655596
          %v1377 = vmul.f32 %v1374, %v1376
          %v1378 = vadd.f32 %v1377, -0.4999988
          %v1379 = vmul.f32 %v1374, %v1378
          %v1380 = vadd.f32 1.0, %v1379
          %v1381 = vmul.f32 %v1372, %v1372
          %v1382 = vmul.f32 %v1381, -0.00019511016
          %v1383 = vadd.f32 %v1382, 0.008332121
          %v1384 = vmul.f32 %v1381, %v1383
          %v1385 = vadd.f32 %v1384, -0.16666654
          %v1386 = vmul.f32 %v1381, %v1385
          %v1387 = vadd.f32 %v1386, 1.0
          %v1388 = vmul.f32 %v1387, %v1372
          %vm1389 = vweird.f32 %v460
          %v1390 = vadd.s32 %v1373, 3
          %v1391 = vand.u32 %v1390, 3
          %vm1392 = vcmp.lt.s32.totalorder %v1391, 2
          %vm1393 = vcmp.eq.s32.totalorder %v1391, 0
          %v1394 = vxor.u32 %v1388, 2147483648
          %v1395 = vsel %vm1393, %v1380, %v1394
          %vm1396 = vcmp.eq.s32.totalorder %v1391, 2
          %v1397 = vxor.u32 %v1380, 2147483648
          %v1398 = vsel %vm1396, %v1397, %v1388
          %v1399 = vsel %vm1392, %v1395, %v1398
          %v1400 = vsel %vm1389, nan, %v1399
          %v1401 = vand.u32 2147483647, %v461
          %vm1402 = vcmp.le.f32.partialorder %v1401, 0.7853982
          %vm1403 = vcmp.lt.s32.totalorder %v461, 0
          %v1404 = vand.u32 %v461, 2139095040
          %v1405 = vshrl.u32 %v1404, 23
          %v1406 = vsub.s32 %v1405, 127
          %v1407 = vand.u32 2147483647, %v461
          %v1408 = vand.u32 %v1407, 8388607
          %v1409 = vor.u32 %v1408, 8388608
          %v1410 = vsub.s32 0, %v1409
          %v1411 = vadd.s32 %v1406, 1
          %vm1412 = vcmp.gt.s32.totalorder %v1411, 0
          %v1413 = vsel %vm1412, %v1411, 0
          %v1414 = vshrl.u32 %v1413, 5
          %v1415 = vand.u32 %v1413, 31
          %v1416 = vsub.s32 32, %v1415
          %v1417 = vshrl.u32 683565275, %v1416
          %v1418 = vshll.u32 683565275, %v1415
          %v1419 = vshrl.u32 2475754826, %v1416
          %v1420 = vor.u32 %v1418, %v1419
          %v1421 = vshll.u32 2475754826, %v1415
          %v1422 = vshrl.u32 2131351028, %v1416
          %v1423 = vor.u32 %v1421, %v1422
          %v1424 = vshll.u32 2131351028, %v1415
          %v1425 = vshrl.u32 2102212464, %v1416
          %v1426 = vor.u32 %v1424, %v1425
          %v1427 = vshll.u32 2102212464, %v1415
          %v1428 = vshrl.u32 920167782, %v1416
          %v1429 = vor.u32 %v1427, %v1428
          %v1430 = vshll.u32 920167782, %v1415
          %v1431 = vshrl.u32 1326507024, %v1416
          %v1432 = vor.u32 %v1430, %v1431
          %vm1433 = vcmp.lt.s32.totalorder %v1414, 1
          %vm1434 = vcmp.lt.s32.totalorder %v1414, 2
          %vm1435 = vcmp.lt.s32.totalorder %v1414, 3
          %vm1436 = vcmp.lt.s32.totalorder %v1414, 4
          %v1437 = vsel %vm1433, %v1417, %v1420
          %v1438 = vsel %vm1436, %v1426, 2102212464
          %v1439 = vsel %vm1435, %v1423, %v1438
          %v1440 = vsel %vm1434, %v1437, %v1439
          %v1441 = vsel %vm1433, %v1420, %v1423
          %v1442 = vsel %vm1436, %v1429, 920167782
          %v1443 = vsel %vm1435, %v1426, %v1442
          %v1444 = vsel %vm1434, %v1441, %v1443
          %v1445 = vsel %vm1433, %v1423, %v1426
          %v1446 = vsel %vm1436, %v1432, 1326507024
          %v1447 = vsel %vm1435, %v1429, %v1446
          %v1448 = vsel %vm1434, %v1445, %v1447
          %v1449 = vshll.u32 %v1409, 8
          %v1450 = vand.u32 %v1449, 65535
          %v1451 = vshrl.u32 %v1449, 16
          %v1452 = vand.u32 %v1448, 65535
          %v1453 = vshrl.u32 %v1448, 16
          %v1454 = vmul.u32 %v1450, %v1452
          %v1455 = vmul.u32 %v1450, %v1453
          %v1456 = vmul.u32 %v1451, %v1452
          %v1457 = vmul.u32 %v1451, %v1453
          %v1458 = vshll.u32 %v1455, 16
          %v1459 = vshrl.u32 %v1455, 16
          %v1460 = vshll.u32 %v1456, 16
          %v1461 = vshrl.u32 %v1456, 16
          %vm1462 = vc.u32 %v1454, %v1458
          %v1463 = vsel %vm1462, 1, 0
          %v1464 = vadd.s32 %v1454, %v1458
          %v1465 = vadd.s32 %v1457, %v1463
          %vm1466 = vc.u32 %v1464, %v1460
          %v1467 = vsel %vm1466, 1, 0
          %v1468 = vadd.s32 %v1464, %v1460
          %v1469 = vadd.s32 %v1465, %v1467
          %v1470 = vadd.s32 %v1469, %v1459
          %v1471 = vadd.s32 %v1470, %v1461
          %v1472 = vand.u32 %v1449, 65535
          %v1473 = vshrl.u32 %v1449, 16
          %v1474 = vand.u32 %v1444, 65535
          %v1475 = vshrl.u32 %v1444, 16
          %v1476 = vmul.u32 %v1472, %v1474
          %v1477 = vmul.u32 %v1472, %v1475
          %v1478 = vmul.u32 %v1473, %v1474
          %v1479 = vmul.u32 %v1473, %v1475
          %v1480 = vshll.u32 %v1477, 16
          %v1481 = vshrl.u32 %v1477, 16
          %v1482 = vshll.u32 %v1478, 16
          %v1483 = vshrl.u32 %v1478, 16
          %vm1484 = vc.u32 %v1476, %v1480
          %v1485 = vsel %vm1484, 1, 0
          %v1486 = vadd.s32 %v1476, %v1480
          %v1487 = vadd.s32 %v1479, %v1485
          %vm1488 = vc.u32 %v1486, %v1482
          %v1489 = vsel %vm1488, 1, 0
          %v1490 = vadd.s32 %v1486, %v1482
          %v1491 = vadd.s32 %v1487, %v1489
          %v1492 = vadd.s32 %v1491, %v1481
          %v1493 = vadd.s32 %v1492, %v1483
          %v1494 = vmul.u32 %v1449, %v1440
          %v1495 = vadd.s32 %v1471, %v1490
          %vm1496 = vc.u32 %v1471, %v1490
          %v1497 = vadd.s32 %v1493, 1
          %v1498 = vsel %vm1496, %v1497, %v1493
          %v1499 = vadd.s32 %v1494, %v1498
          %v1500 = vadd.s32 %v1499, 536870912
          %v1501 = vshrl.u32 %v1500, 30
          %v1502 = vshll.u32 %v1501, 30
          %v1503 = vsub.s32 %v1499, %v1502
          %vm1504 = vcmp.lt.s32.totalorder %v1503, 0
          %v1505 = vsub.s32 0, %v1503
          %v1506 = vsel %vm1504, %v1505, %v1503
          %v1507 = vclz %v1506
          %v1508 = vsub.s32 %v1507, 2
          %vm1509 = vcmp.gt.s32.totalorder 0, %v1508
          %v1510 = vsel %vm1509, 0, %v1508
          %v1511 = vsub.s32 32, %v1510
          %v1512 = vshll.u32 %v1503, %v1510
          %v1513 = vshrl.u32 %v1495, %v1511
          %v1514 = vor.u32 %v1512, %v1513
          %v1515 = vsub.s32 4294967266, %v1510
          %v1516 = vadd.s32 %v1515, 127
          %v1517 = vshll.u32 %v1516, 23
          %v1518 = vor.u32 4788187, %v1517
          %v1519 = vand.u32 2147483647, %v1518
          %v1521 = vcvt.s32.f32 %v1514
          %v1522 = vmul.f32 %v1521, %v1519
          %v1523 = vxor.u32 %v1522, 2147483648
          %v1524 = vsel %vm1403, %v1523, %v1522
          %v1525 = vsub.s32 4, %v1501
          %v1526 = vsel %vm1403, %v1525, %v1501
          %v1527 = vsel %vm1402, %v461, %v1524
          %v1528 = vsel %vm1402, 0, %v1526
          %v1529 = vmul.f32 %v1527, %v1527
          %v1530 = vmul.f32 %v1529, -0.001358992
          %v1531 = vadd.f32 %v1530, 0.041655596
          %v1532 = vmul.f32 %v1529, %v1531
          %v1533 = vadd.f32 %v1532, -0.4999988
          %v1534 = vmul.f32 %v1529, %v1533
          %v1535 = vadd.f32 1.0, %v1534
          %v1536 = vmul.f32 %v1527, %v1527
          %v1537 = vmul.f32 %v1536, -0.00019511016
          %v1538 = vadd.f32 %v1537, 0.008332121
          %v1539 = vmul.f32 %v1536, %v1538
          %v1540 = vadd.f32 %v1539, -0.16666654
          %v1541 = vmul.f32 %v1536, %v1540
          %v1542 = vadd.f32 %v1541, 1.0
          %v1543 = vmul.f32 %v1542, %v1527
          %vm1544 = vweird.f32 %v461
          %v1545 = vadd.s32 %v1528, 3
          %v1546 = vand.u32 %v1545, 3
          %vm1547 = vcmp.lt.s32.totalorder %v1546, 2
          %vm1548 = vcmp.eq.s32.totalorder %v1546, 0
          %v1549 = vxor.u32 %v1543, 2147483648
          %v1550 = vsel %vm1548, %v1535, %v1549
          %vm1551 = vcmp.eq.s32.totalorder %v1546, 2
          %v1552 = vxor.u32 %v1535, 2147483648
          %v1553 = vsel %vm1551, %v1552, %v1543
          %v1554 = vsel %vm1547, %v1550, %v1553
          %v1555 = vsel %vm1544, nan, %v1554
          %v1556 = vand.u32 2147483647, %v462
          %vm1557 = vcmp.le.f32.partialorder %v1556, 0.7853982
          %vm1558 = vcmp.lt.s32.totalorder %v462, 0
          %v1559 = vand.u32 %v462, 2139095040
          %v1560 = vshrl.u32 %v1559, 23
          %v1561 = vsub.s32 %v1560, 127
          %v1562 = vand.u32 2147483647, %v462
          %v1563 = vand.u32 %v1562, 8388607
          %v1564 = vor.u32 %v1563, 8388608
          %v1565 = vsub.s32 0, %v1564
          %v1566 = vadd.s32 %v1561, 1
          %vm1567 = vcmp.gt.s32.totalorder %v1566, 0
          %v1568 = vsel %vm1567, %v1566, 0
          %v1569 = vshrl.u32 %v1568, 5
          %v1570 = vand.u32 %v1568, 31
          %v1571 = vsub.s32 32, %v1570
          %v1572 = vshrl.u32 683565275, %v1571
          %v1573 = vshll.u32 683565275, %v1570
          %v1574 = vshrl.u32 2475754826, %v1571
          %v1575 = vor.u32 %v1573, %v1574
          %v1576 = vshll.u32 2475754826, %v1570
          %v1577 = vshrl.u32 2131351028, %v1571
          %v1578 = vor.u32 %v1576, %v1577
          %v1579 = vshll.u32 2131351028, %v1570
          %v1580 = vshrl.u32 2102212464, %v1571
          %v1581 = vor.u32 %v1579, %v1580
          %v1582 = vshll.u32 2102212464, %v1570
          %v1583 = vshrl.u32 920167782, %v1571
          %v1584 = vor.u32 %v1582, %v1583
          %v1585 = vshll.u32 920167782, %v1570
          %v1586 = vshrl.u32 1326507024, %v1571
          %v1587 = vor.u32 %v1585, %v1586
          %vm1588 = vcmp.lt.s32.totalorder %v1569, 1
          %vm1589 = vcmp.lt.s32.totalorder %v1569, 2
          %vm1590 = vcmp.lt.s32.totalorder %v1569, 3
          %vm1591 = vcmp.lt.s32.totalorder %v1569, 4
          %v1592 = vsel %vm1588, %v1572, %v1575
          %v1593 = vsel %vm1591, %v1581, 2102212464
          %v1594 = vsel %vm1590, %v1578, %v1593
          %v1595 = vsel %vm1589, %v1592, %v1594
          %v1596 = vsel %vm1588, %v1575, %v1578
          %v1597 = vsel %vm1591, %v1584, 920167782
          %v1598 = vsel %vm1590, %v1581, %v1597
          %v1599 = vsel %vm1589, %v1596, %v1598
          %v1600 = vsel %vm1588, %v1578, %v1581
          %v1601 = vsel %vm1591, %v1587, 1326507024
          %v1602 = vsel %vm1590, %v1584, %v1601
          %v1603 = vsel %vm1589, %v1600, %v1602
          %v1604 = vshll.u32 %v1564, 8
          %v1605 = vand.u32 %v1604, 65535
          %v1606 = vshrl.u32 %v1604, 16
          %v1607 = vand.u32 %v1603, 65535
          %v1608 = vshrl.u32 %v1603, 16
          %v1609 = vmul.u32 %v1605, %v1607
          %v1610 = vmul.u32 %v1605, %v1608
          %v1611 = vmul.u32 %v1606, %v1607
          %v1612 = vmul.u32 %v1606, %v1608
          %v1613 = vshll.u32 %v1610, 16
          %v1614 = vshrl.u32 %v1610, 16
          %v1615 = vshll.u32 %v1611, 16
          %v1616 = vshrl.u32 %v1611, 16
          %vm1617 = vc.u32 %v1609, %v1613
          %v1618 = vsel %vm1617, 1, 0
          %v1619 = vadd.s32 %v1609, %v1613
          %v1620 = vadd.s32 %v1612, %v1618
          %vm1621 = vc.u32 %v1619, %v1615
          %v1622 = vsel %vm1621, 1, 0
          %v1623 = vadd.s32 %v1619, %v1615
          %v1624 = vadd.s32 %v1620, %v1622
          %v1625 = vadd.s32 %v1624, %v1614
          %v1626 = vadd.s32 %v1625, %v1616
          %v1627 = vand.u32 %v1604, 65535
          %v1628 = vshrl.u32 %v1604, 16
          %v1629 = vand.u32 %v1599, 65535
          %v1630 = vshrl.u32 %v1599, 16
          %v1631 = vmul.u32 %v1627, %v1629
          %v1632 = vmul.u32 %v1627, %v1630
          %v1633 = vmul.u32 %v1628, %v1629
          %v1634 = vmul.u32 %v1628, %v1630
          %v1635 = vshll.u32 %v1632, 16
          %v1636 = vshrl.u32 %v1632, 16
          %v1637 = vshll.u32 %v1633, 16
          %v1638 = vshrl.u32 %v1633, 16
          %vm1639 = vc.u32 %v1631, %v1635
          %v1640 = vsel %vm1639, 1, 0
          %v1641 = vadd.s32 %v1631, %v1635
          %v1642 = vadd.s32 %v1634, %v1640
          %vm1643 = vc.u32 %v1641, %v1637
          %v1644 = vsel %vm1643, 1, 0
          %v1645 = vadd.s32 %v1641, %v1637
          %v1646 = vadd.s32 %v1642, %v1644
          %v1647 = vadd.s32 %v1646, %v1636
          %v1648 = vadd.s32 %v1647, %v1638
          %v1649 = vmul.u32 %v1604, %v1595
          %v1650 = vadd.s32 %v1626, %v1645
          %vm1651 = vc.u32 %v1626, %v1645
          %v1652 = vadd.s32 %v1648, 1
          %v1653 = vsel %vm1651, %v1652, %v1648
          %v1654 = vadd.s32 %v1649, %v1653
          %v1655 = vadd.s32 %v1654, 536870912
          %v1656 = vshrl.u32 %v1655, 30
          %v1657 = vshll.u32 %v1656, 30
          %v1658 = vsub.s32 %v1654, %v1657
          %vm1659 = vcmp.lt.s32.totalorder %v1658, 0
          %v1660 = vsub.s32 0, %v1658
          %v1661 = vsel %vm1659, %v1660, %v1658
          %v1662 = vclz %v1661
          %v1663 = vsub.s32 %v1662, 2
          %vm1664 = vcmp.gt.s32.totalorder 0, %v1663
          %v1665 = vsel %vm1664, 0, %v1663
          %v1666 = vsub.s32 32, %v1665
          %v1667 = vshll.u32 %v1658, %v1665
          %v1668 = vshrl.u32 %v1650, %v1666
          %v1669 = vor.u32 %v1667, %v1668
          %v1670 = vsub.s32 4294967266, %v1665
          %v1671 = vadd.s32 %v1670, 127
          %v1672 = vshll.u32 %v1671, 23
          %v1673 = vor.u32 4788187, %v1672
          %v1674 = vand.u32 2147483647, %v1673
          %v1676 = vcvt.s32.f32 %v1669
          %v1677 = vmul.f32 %v1676, %v1674
          %v1678 = vxor.u32 %v1677, 2147483648
          %v1679 = vsel %vm1558, %v1678, %v1677
          %v1680 = vsub.s32 4, %v1656
          %v1681 = vsel %vm1558, %v1680, %v1656
          %v1682 = vsel %vm1557, %v462, %v1679
          %v1683 = vsel %vm1557, 0, %v1681
          %v1684 = vmul.f32 %v1682, %v1682
          %v1685 = vmul.f32 %v1684, -0.001358992
          %v1686 = vadd.f32 %v1685, 0.041655596
          %v1687 = vmul.f32 %v1684, %v1686
          %v1688 = vadd.f32 %v1687, -0.4999988
          %v1689 = vmul.f32 %v1684, %v1688
          %v1690 = vadd.f32 1.0, %v1689
          %v1691 = vmul.f32 %v1682, %v1682
          %v1692 = vmul.f32 %v1691, -0.00019511016
          %v1693 = vadd.f32 %v1692, 0.008332121
          %v1694 = vmul.f32 %v1691, %v1693
          %v1695 = vadd.f32 %v1694, -0.16666654
          %v1696 = vmul.f32 %v1691, %v1695
          %v1697 = vadd.f32 %v1696, 1.0
          %v1698 = vmul.f32 %v1697, %v1682
          %vm1699 = vweird.f32 %v462
          %v1700 = vadd.s32 %v1683, 3
          %v1701 = vand.u32 %v1700, 3
          %vm1702 = vcmp.lt.s32.totalorder %v1701, 2
          %vm1703 = vcmp.eq.s32.totalorder %v1701, 0
          %v1704 = vxor.u32 %v1698, 2147483648
          %v1705 = vsel %vm1703, %v1690, %v1704
          %vm1706 = vcmp.eq.s32.totalorder %v1701, 2
          %v1707 = vxor.u32 %v1690, 2147483648
          %v1708 = vsel %vm1706, %v1707, %v1698
          %v1709 = vsel %vm1702, %v1705, %v1708
          %v1710 = vsel %vm1699, nan, %v1709
          %v1711 = vand.u32 2147483647, %v463
          %vm1712 = vcmp.le.f32.partialorder %v1711, 0.7853982
          %vm1713 = vcmp.lt.s32.totalorder %v463, 0
          %v1714 = vand.u32 %v463, 2139095040
          %v1715 = vshrl.u32 %v1714, 23
          %v1716 = vsub.s32 %v1715, 127
          %v1717 = vand.u32 2147483647, %v463
          %v1718 = vand.u32 %v1717, 8388607
          %v1719 = vor.u32 %v1718, 8388608
          %v1720 = vsub.s32 0, %v1719
          %v1721 = vadd.s32 %v1716, 1
          %vm1722 = vcmp.gt.s32.totalorder %v1721, 0
          %v1723 = vsel %vm1722, %v1721, 0
          %v1724 = vshrl.u32 %v1723, 5
          %v1725 = vand.u32 %v1723, 31
          %v1726 = vsub.s32 32, %v1725
          %v1727 = vshrl.u32 683565275, %v1726
          %v1728 = vshll.u32 683565275, %v1725
          %v1729 = vshrl.u32 2475754826, %v1726
          %v1730 = vor.u32 %v1728, %v1729
          %v1731 = vshll.u32 2475754826, %v1725
          %v1732 = vshrl.u32 2131351028, %v1726
          %v1733 = vor.u32 %v1731, %v1732
          %v1734 = vshll.u32 2131351028, %v1725
          %v1735 = vshrl.u32 2102212464, %v1726
          %v1736 = vor.u32 %v1734, %v1735
          %v1737 = vshll.u32 2102212464, %v1725
          %v1738 = vshrl.u32 920167782, %v1726
          %v1739 = vor.u32 %v1737, %v1738
          %v1740 = vshll.u32 920167782, %v1725
          %v1741 = vshrl.u32 1326507024, %v1726
          %v1742 = vor.u32 %v1740, %v1741
          %vm1743 = vcmp.lt.s32.totalorder %v1724, 1
          %vm1744 = vcmp.lt.s32.totalorder %v1724, 2
          %vm1745 = vcmp.lt.s32.totalorder %v1724, 3
          %vm1746 = vcmp.lt.s32.totalorder %v1724, 4
          %v1747 = vsel %vm1743, %v1727, %v1730
          %v1748 = vsel %vm1746, %v1736, 2102212464
          %v1749 = vsel %vm1745, %v1733, %v1748
          %v1750 = vsel %vm1744, %v1747, %v1749
          %v1751 = vsel %vm1743, %v1730, %v1733
          %v1752 = vsel %vm1746, %v1739, 920167782
          %v1753 = vsel %vm1745, %v1736, %v1752
          %v1754 = vsel %vm1744, %v1751, %v1753
          %v1755 = vsel %vm1743, %v1733, %v1736
          %v1756 = vsel %vm1746, %v1742, 1326507024
          %v1757 = vsel %vm1745, %v1739, %v1756
          %v1758 = vsel %vm1744, %v1755, %v1757
          %v1759 = vshll.u32 %v1719, 8
          %v1760 = vand.u32 %v1759, 65535
          %v1761 = vshrl.u32 %v1759, 16
          %v1762 = vand.u32 %v1758, 65535
          %v1763 = vshrl.u32 %v1758, 16
          %v1764 = vmul.u32 %v1760, %v1762
          %v1765 = vmul.u32 %v1760, %v1763
          %v1766 = vmul.u32 %v1761, %v1762
          %v1767 = vmul.u32 %v1761, %v1763
          %v1768 = vshll.u32 %v1765, 16
          %v1769 = vshrl.u32 %v1765, 16
          %v1770 = vshll.u32 %v1766, 16
          %v1771 = vshrl.u32 %v1766, 16
          %vm1772 = vc.u32 %v1764, %v1768
          %v1773 = vsel %vm1772, 1, 0
          %v1774 = vadd.s32 %v1764, %v1768
          %v1775 = vadd.s32 %v1767, %v1773
          %vm1776 = vc.u32 %v1774, %v1770
          %v1777 = vsel %vm1776, 1, 0
          %v1778 = vadd.s32 %v1774, %v1770
          %v1779 = vadd.s32 %v1775, %v1777
          %v1780 = vadd.s32 %v1779, %v1769
          %v1781 = vadd.s32 %v1780, %v1771
          %v1782 = vand.u32 %v1759, 65535
          %v1783 = vshrl.u32 %v1759, 16
          %v1784 = vand.u32 %v1754, 65535
          %v1785 = vshrl.u32 %v1754, 16
          %v1786 = vmul.u32 %v1782, %v1784
          %v1787 = vmul.u32 %v1782, %v1785
          %v1788 = vmul.u32 %v1783, %v1784
          %v1789 = vmul.u32 %v1783, %v1785
          %v1790 = vshll.u32 %v1787, 16
          %v1791 = vshrl.u32 %v1787, 16
          %v1792 = vshll.u32 %v1788, 16
          %v1793 = vshrl.u32 %v1788, 16
          %vm1794 = vc.u32 %v1786, %v1790
          %v1795 = vsel %vm1794, 1, 0
          %v1796 = vadd.s32 %v1786, %v1790
          %v1797 = vadd.s32 %v1789, %v1795
          %vm1798 = vc.u32 %v1796, %v1792
          %v1799 = vsel %vm1798, 1, 0
          %v1800 = vadd.s32 %v1796, %v1792
          %v1801 = vadd.s32 %v1797, %v1799
          %v1802 = vadd.s32 %v1801, %v1791
          %v1803 = vadd.s32 %v1802, %v1793
          %v1804 = vmul.u32 %v1759, %v1750
          %v1805 = vadd.s32 %v1781, %v1800
          %vm1806 = vc.u32 %v1781, %v1800
          %v1807 = vadd.s32 %v1803, 1
          %v1808 = vsel %vm1806, %v1807, %v1803
          %v1809 = vadd.s32 %v1804, %v1808
          %v1810 = vadd.s32 %v1809, 536870912
          %v1811 = vshrl.u32 %v1810, 30
          %v1812 = vshll.u32 %v1811, 30
          %v1813 = vsub.s32 %v1809, %v1812
          %vm1814 = vcmp.lt.s32.totalorder %v1813, 0
          %v1815 = vsub.s32 0, %v1813
          %v1816 = vsel %vm1814, %v1815, %v1813
          %v1817 = vclz %v1816
          %v1818 = vsub.s32 %v1817, 2
          %vm1819 = vcmp.gt.s32.totalorder 0, %v1818
          %v1820 = vsel %vm1819, 0, %v1818
          %v1821 = vsub.s32 32, %v1820
          %v1822 = vshll.u32 %v1813, %v1820
          %v1823 = vshrl.u32 %v1805, %v1821
          %v1824 = vor.u32 %v1822, %v1823
          %v1825 = vsub.s32 4294967266, %v1820
          %v1826 = vadd.s32 %v1825, 127
          %v1827 = vshll.u32 %v1826, 23
          %v1828 = vor.u32 4788187, %v1827
          %v1829 = vand.u32 2147483647, %v1828
          %v1831 = vcvt.s32.f32 %v1824
          %v1832 = vmul.f32 %v1831, %v1829
          %v1833 = vxor.u32 %v1832, 2147483648
          %v1834 = vsel %vm1713, %v1833, %v1832
          %v1835 = vsub.s32 4, %v1811
          %v1836 = vsel %vm1713, %v1835, %v1811
          %v1837 = vsel %vm1712, %v463, %v1834
          %v1838 = vsel %vm1712, 0, %v1836
          %v1839 = vmul.f32 %v1837, %v1837
          %v1840 = vmul.f32 %v1839, -0.001358992
          %v1841 = vadd.f32 %v1840, 0.041655596
          %v1842 = vmul.f32 %v1839, %v1841
          %v1843 = vadd.f32 %v1842, -0.4999988
          %v1844 = vmul.f32 %v1839, %v1843
          %v1845 = vadd.f32 1.0, %v1844
          %v1846 = vmul.f32 %v1837, %v1837
          %v1847 = vmul.f32 %v1846, -0.00019511016
          %v1848 = vadd.f32 %v1847, 0.008332121
          %v1849 = vmul.f32 %v1846, %v1848
          %v1850 = vadd.f32 %v1849, -0.16666654
          %v1851 = vmul.f32 %v1846, %v1850
          %v1852 = vadd.f32 %v1851, 1.0
          %v1853 = vmul.f32 %v1852, %v1837
          %vm1854 = vweird.f32 %v463
          %v1855 = vadd.s32 %v1838, 3
          %v1856 = vand.u32 %v1855, 3
          %vm1857 = vcmp.lt.s32.totalorder %v1856, 2
          %vm1858 = vcmp.eq.s32.totalorder %v1856, 0
          %v1859 = vxor.u32 %v1853, 2147483648
          %v1860 = vsel %vm1858, %v1845, %v1859
          %vm1861 = vcmp.eq.s32.totalorder %v1856, 2
          %v1862 = vxor.u32 %v1845, 2147483648
          %v1863 = vsel %vm1861, %v1862, %v1853
          %v1864 = vsel %vm1857, %v1860, %v1863
          %v1865 = vsel %vm1854, nan, %v1864
          %v1866 = vand.u32 2147483647, %v464
          %vm1867 = vcmp.le.f32.partialorder %v1866, 0.7853982
          %vm1868 = vcmp.lt.s32.totalorder %v464, 0
          %v1869 = vand.u32 %v464, 2139095040
          %v1870 = vshrl.u32 %v1869, 23
          %v1871 = vsub.s32 %v1870, 127
          %v1872 = vand.u32 2147483647, %v464
          %v1873 = vand.u32 %v1872, 8388607
          %v1874 = vor.u32 %v1873, 8388608
          %v1875 = vsub.s32 0, %v1874
          %v1876 = vadd.s32 %v1871, 1
          %vm1877 = vcmp.gt.s32.totalorder %v1876, 0
          %v1878 = vsel %vm1877, %v1876, 0
          %v1879 = vshrl.u32 %v1878, 5
          %v1880 = vand.u32 %v1878, 31
          %v1881 = vsub.s32 32, %v1880
          %v1882 = vshrl.u32 683565275, %v1881
          %v1883 = vshll.u32 683565275, %v1880
          %v1884 = vshrl.u32 2475754826, %v1881
          %v1885 = vor.u32 %v1883, %v1884
          %v1886 = vshll.u32 2475754826, %v1880
          %v1887 = vshrl.u32 2131351028, %v1881
          %v1888 = vor.u32 %v1886, %v1887
          %v1889 = vshll.u32 2131351028, %v1880
          %v1890 = vshrl.u32 2102212464, %v1881
          %v1891 = vor.u32 %v1889, %v1890
          %v1892 = vshll.u32 2102212464, %v1880
          %v1893 = vshrl.u32 920167782, %v1881
          %v1894 = vor.u32 %v1892, %v1893
          %v1895 = vshll.u32 920167782, %v1880
          %v1896 = vshrl.u32 1326507024, %v1881
          %v1897 = vor.u32 %v1895, %v1896
          %vm1898 = vcmp.lt.s32.totalorder %v1879, 1
          %vm1899 = vcmp.lt.s32.totalorder %v1879, 2
          %vm1900 = vcmp.lt.s32.totalorder %v1879, 3
          %vm1901 = vcmp.lt.s32.totalorder %v1879, 4
          %v1902 = vsel %vm1898, %v1882, %v1885
          %v1903 = vsel %vm1901, %v1891, 2102212464
          %v1904 = vsel %vm1900, %v1888, %v1903
          %v1905 = vsel %vm1899, %v1902, %v1904
          %v1906 = vsel %vm1898, %v1885, %v1888
          %v1907 = vsel %vm1901, %v1894, 920167782
          %v1908 = vsel %vm1900, %v1891, %v1907
          %v1909 = vsel %vm1899, %v1906, %v1908
          %v1910 = vsel %vm1898, %v1888, %v1891
          %v1911 = vsel %vm1901, %v1897, 1326507024
          %v1912 = vsel %vm1900, %v1894, %v1911
          %v1913 = vsel %vm1899, %v1910, %v1912
          %v1914 = vshll.u32 %v1874, 8
          %v1915 = vand.u32 %v1914, 65535
          %v1916 = vshrl.u32 %v1914, 16
          %v1917 = vand.u32 %v1913, 65535
          %v1918 = vshrl.u32 %v1913, 16
          %v1919 = vmul.u32 %v1915, %v1917
          %v1920 = vmul.u32 %v1915, %v1918
          %v1921 = vmul.u32 %v1916, %v1917
          %v1922 = vmul.u32 %v1916, %v1918
          %v1923 = vshll.u32 %v1920, 16
          %v1924 = vshrl.u32 %v1920, 16
          %v1925 = vshll.u32 %v1921, 16
          %v1926 = vshrl.u32 %v1921, 16
          %vm1927 = vc.u32 %v1919, %v1923
          %v1928 = vsel %vm1927, 1, 0
          %v1929 = vadd.s32 %v1919, %v1923
          %v1930 = vadd.s32 %v1922, %v1928
          %vm1931 = vc.u32 %v1929, %v1925
          %v1932 = vsel %vm1931, 1, 0
          %v1933 = vadd.s32 %v1929, %v1925
          %v1934 = vadd.s32 %v1930, %v1932
          %v1935 = vadd.s32 %v1934, %v1924
          %v1936 = vadd.s32 %v1935, %v1926
          %v1937 = vand.u32 %v1914, 65535
          %v1938 = vshrl.u32 %v1914, 16
          %v1939 = vand.u32 %v1909, 65535
          %v1940 = vshrl.u32 %v1909, 16
          %v1941 = vmul.u32 %v1937, %v1939
          %v1942 = vmul.u32 %v1937, %v1940
          %v1943 = vmul.u32 %v1938, %v1939
          %v1944 = vmul.u32 %v1938, %v1940
          %v1945 = vshll.u32 %v1942, 16
          %v1946 = vshrl.u32 %v1942, 16
          %v1947 = vshll.u32 %v1943, 16
          %v1948 = vshrl.u32 %v1943, 16
          %vm1949 = vc.u32 %v1941, %v1945
          %v1950 = vsel %vm1949, 1, 0
          %v1951 = vadd.s32 %v1941, %v1945
          %v1952 = vadd.s32 %v1944, %v1950
          %vm1953 = vc.u32 %v1951, %v1947
          %v1954 = vsel %vm1953, 1, 0
          %v1955 = vadd.s32 %v1951, %v1947
          %v1956 = vadd.s32 %v1952, %v1954
          %v1957 = vadd.s32 %v1956, %v1946
          %v1958 = vadd.s32 %v1957, %v1948
          %v1959 = vmul.u32 %v1914, %v1905
          %v1960 = vadd.s32 %v1936, %v1955
          %vm1961 = vc.u32 %v1936, %v1955
          %v1962 = vadd.s32 %v1958, 1
          %v1963 = vsel %vm1961, %v1962, %v1958
          %v1964 = vadd.s32 %v1959, %v1963
          %v1965 = vadd.s32 %v1964, 536870912
          %v1966 = vshrl.u32 %v1965, 30
          %v1967 = vshll.u32 %v1966, 30
          %v1968 = vsub.s32 %v1964, %v1967
          %vm1969 = vcmp.lt.s32.totalorder %v1968, 0
          %v1970 = vsub.s32 0, %v1968
          %v1971 = vsel %vm1969, %v1970, %v1968
          %v1972 = vclz %v1971
          %v1973 = vsub.s32 %v1972, 2
          %vm1974 = vcmp.gt.s32.totalorder 0, %v1973
          %v1975 = vsel %vm1974, 0, %v1973
          %v1976 = vsub.s32 32, %v1975
          %v1977 = vshll.u32 %v1968, %v1975
          %v1978 = vshrl.u32 %v1960, %v1976
          %v1979 = vor.u32 %v1977, %v1978
          %v1980 = vsub.s32 4294967266, %v1975
          %v1981 = vadd.s32 %v1980, 127
          %v1982 = vshll.u32 %v1981, 23
          %v1983 = vor.u32 4788187, %v1982
          %v1984 = vand.u32 2147483647, %v1983
          %v1986 = vcvt.s32.f32 %v1979
          %v1987 = vmul.f32 %v1986, %v1984
          %v1988 = vxor.u32 %v1987, 2147483648
          %v1989 = vsel %vm1868, %v1988, %v1987
          %v1990 = vsub.s32 4, %v1966
          %v1991 = vsel %vm1868, %v1990, %v1966
          %v1992 = vsel %vm1867, %v464, %v1989
          %v1993 = vsel %vm1867, 0, %v1991
          %v1994 = vmul.f32 %v1992, %v1992
          %v1995 = vmul.f32 %v1994, -0.001358992
          %v1996 = vadd.f32 %v1995, 0.041655596
          %v1997 = vmul.f32 %v1994, %v1996
          %v1998 = vadd.f32 %v1997, -0.4999988
          %v1999 = vmul.f32 %v1994, %v1998
          %v2000 = vadd.f32 1.0, %v1999
          %v2001 = vmul.f32 %v1992, %v1992
          %v2002 = vmul.f32 %v2001, -0.00019511016
          %v2003 = vadd.f32 %v2002, 0.008332121
          %v2004 = vmul.f32 %v2001, %v2003
          %v2005 = vadd.f32 %v2004, -0.16666654
          %v2006 = vmul.f32 %v2001, %v2005
          %v2007 = vadd.f32 %v2006, 1.0
          %v2008 = vmul.f32 %v2007, %v1992
          %vm2009 = vweird.f32 %v464
          %v2010 = vadd.s32 %v1993, 3
          %v2011 = vand.u32 %v2010, 3
          %vm2012 = vcmp.lt.s32.totalorder %v2011, 2
          %vm2013 = vcmp.eq.s32.totalorder %v2011, 0
          %v2014 = vxor.u32 %v2008, 2147483648
          %v2015 = vsel %vm2013, %v2000, %v2014
          %vm2016 = vcmp.eq.s32.totalorder %v2011, 2
          %v2017 = vxor.u32 %v2000, 2147483648
          %v2018 = vsel %vm2016, %v2017, %v2008
          %v2019 = vsel %vm2012, %v2015, %v2018
          %v2020 = vsel %vm2009, nan, %v2019
          %v2021 = vand.u32 2147483647, %v465
          %vm2022 = vcmp.le.f32.partialorder %v2021, 0.7853982
          %vm2023 = vcmp.lt.s32.totalorder %v465, 0
          %v2024 = vand.u32 %v465, 2139095040
          %v2025 = vshrl.u32 %v2024, 23
          %v2026 = vsub.s32 %v2025, 127
          %v2027 = vand.u32 2147483647, %v465
          %v2028 = vand.u32 %v2027, 8388607
          %v2029 = vor.u32 %v2028, 8388608
          %v2030 = vsub.s32 0, %v2029
          %v2031 = vadd.s32 %v2026, 1
          %vm2032 = vcmp.gt.s32.totalorder %v2031, 0
          %v2033 = vsel %vm2032, %v2031, 0
          %v2034 = vshrl.u32 %v2033, 5
          %v2035 = vand.u32 %v2033, 31
          %v2036 = vsub.s32 32, %v2035
          %v2037 = vshrl.u32 683565275, %v2036
          %v2038 = vshll.u32 683565275, %v2035
          %v2039 = vshrl.u32 2475754826, %v2036
          %v2040 = vor.u32 %v2038, %v2039
          %v2041 = vshll.u32 2475754826, %v2035
          %v2042 = vshrl.u32 2131351028, %v2036
          %v2043 = vor.u32 %v2041, %v2042
          %v2044 = vshll.u32 2131351028, %v2035
          %v2045 = vshrl.u32 2102212464, %v2036
          %v2046 = vor.u32 %v2044, %v2045
          %v2047 = vshll.u32 2102212464, %v2035
          %v2048 = vshrl.u32 920167782, %v2036
          %v2049 = vor.u32 %v2047, %v2048
          %v2050 = vshll.u32 920167782, %v2035
          %v2051 = vshrl.u32 1326507024, %v2036
          %v2052 = vor.u32 %v2050, %v2051
          %vm2053 = vcmp.lt.s32.totalorder %v2034, 1
          %vm2054 = vcmp.lt.s32.totalorder %v2034, 2
          %vm2055 = vcmp.lt.s32.totalorder %v2034, 3
          %vm2056 = vcmp.lt.s32.totalorder %v2034, 4
          %v2057 = vsel %vm2053, %v2037, %v2040
          %v2058 = vsel %vm2056, %v2046, 2102212464
          %v2059 = vsel %vm2055, %v2043, %v2058
          %v2060 = vsel %vm2054, %v2057, %v2059
          %v2061 = vsel %vm2053, %v2040, %v2043
          %v2062 = vsel %vm2056, %v2049, 920167782
          %v2063 = vsel %vm2055, %v2046, %v2062
          %v2064 = vsel %vm2054, %v2061, %v2063
          %v2065 = vsel %vm2053, %v2043, %v2046
          %v2066 = vsel %vm2056, %v2052, 1326507024
          %v2067 = vsel %vm2055, %v2049, %v2066
          %v2068 = vsel %vm2054, %v2065, %v2067
          %v2069 = vshll.u32 %v2029, 8
          %v2070 = vand.u32 %v2069, 65535
          %v2071 = vshrl.u32 %v2069, 16
          %v2072 = vand.u32 %v2068, 65535
          %v2073 = vshrl.u32 %v2068, 16
          %v2074 = vmul.u32 %v2070, %v2072
          %v2075 = vmul.u32 %v2070, %v2073
          %v2076 = vmul.u32 %v2071, %v2072
          %v2077 = vmul.u32 %v2071, %v2073
          %v2078 = vshll.u32 %v2075, 16
          %v2079 = vshrl.u32 %v2075, 16
          %v2080 = vshll.u32 %v2076, 16
          %v2081 = vshrl.u32 %v2076, 16
          %vm2082 = vc.u32 %v2074, %v2078
          %v2083 = vsel %vm2082, 1, 0
          %v2084 = vadd.s32 %v2074, %v2078
          %v2085 = vadd.s32 %v2077, %v2083
          %vm2086 = vc.u32 %v2084, %v2080
          %v2087 = vsel %vm2086, 1, 0
          %v2088 = vadd.s32 %v2084, %v2080
          %v2089 = vadd.s32 %v2085, %v2087
          %v2090 = vadd.s32 %v2089, %v2079
          %v2091 = vadd.s32 %v2090, %v2081
          %v2092 = vand.u32 %v2069, 65535
          %v2093 = vshrl.u32 %v2069, 16
          %v2094 = vand.u32 %v2064, 65535
          %v2095 = vshrl.u32 %v2064, 16
          %v2096 = vmul.u32 %v2092, %v2094
          %v2097 = vmul.u32 %v2092, %v2095
          %v2098 = vmul.u32 %v2093, %v2094
          %v2099 = vmul.u32 %v2093, %v2095
          %v2100 = vshll.u32 %v2097, 16
          %v2101 = vshrl.u32 %v2097, 16
          %v2102 = vshll.u32 %v2098, 16
          %v2103 = vshrl.u32 %v2098, 16
          %vm2104 = vc.u32 %v2096, %v2100
          %v2105 = vsel %vm2104, 1, 0
          %v2106 = vadd.s32 %v2096, %v2100
          %v2107 = vadd.s32 %v2099, %v2105
          %vm2108 = vc.u32 %v2106, %v2102
          %v2109 = vsel %vm2108, 1, 0
          %v2110 = vadd.s32 %v2106, %v2102
          %v2111 = vadd.s32 %v2107, %v2109
          %v2112 = vadd.s32 %v2111, %v2101
          %v2113 = vadd.s32 %v2112, %v2103
          %v2114 = vmul.u32 %v2069, %v2060
          %v2115 = vadd.s32 %v2091, %v2110
          %vm2116 = vc.u32 %v2091, %v2110
          %v2117 = vadd.s32 %v2113, 1
          %v2118 = vsel %vm2116, %v2117, %v2113
          %v2119 = vadd.s32 %v2114, %v2118
          %v2120 = vadd.s32 %v2119, 536870912
          %v2121 = vshrl.u32 %v2120, 30
          %v2122 = vshll.u32 %v2121, 30
          %v2123 = vsub.s32 %v2119, %v2122
          %vm2124 = vcmp.lt.s32.totalorder %v2123, 0
          %v2125 = vsub.s32 0, %v2123
          %v2126 = vsel %vm2124, %v2125, %v2123
          %v2127 = vclz %v2126
          %v2128 = vsub.s32 %v2127, 2
          %vm2129 = vcmp.gt.s32.totalorder 0, %v2128
          %v2130 = vsel %vm2129, 0, %v2128
          %v2131 = vsub.s32 32, %v2130
          %v2132 = vshll.u32 %v2123, %v2130
          %v2133 = vshrl.u32 %v2115, %v2131
          %v2134 = vor.u32 %v2132, %v2133
          %v2135 = vsub.s32 4294967266, %v2130
          %v2136 = vadd.s32 %v2135, 127
          %v2137 = vshll.u32 %v2136, 23
          %v2138 = vor.u32 4788187, %v2137
          %v2139 = vand.u32 2147483647, %v2138
          %v2141 = vcvt.s32.f32 %v2134
          %v2142 = vmul.f32 %v2141, %v2139
          %v2143 = vxor.u32 %v2142, 2147483648
          %v2144 = vsel %vm2023, %v2143, %v2142
          %v2145 = vsub.s32 4, %v2121
          %v2146 = vsel %vm2023, %v2145, %v2121
          %v2147 = vsel %vm2022, %v465, %v2144
          %v2148 = vsel %vm2022, 0, %v2146
          %v2149 = vmul.f32 %v2147, %v2147
          %v2150 = vmul.f32 %v2149, -0.001358992
          %v2151 = vadd.f32 %v2150, 0.041655596
          %v2152 = vmul.f32 %v2149, %v2151
          %v2153 = vadd.f32 %v2152, -0.4999988
          %v2154 = vmul.f32 %v2149, %v2153
          %v2155 = vadd.f32 1.0, %v2154
          %v2156 = vmul.f32 %v2147, %v2147
          %v2157 = vmul.f32 %v2156, -0.00019511016
          %v2158 = vadd.f32 %v2157, 0.008332121
          %v2159 = vmul.f32 %v2156, %v2158
          %v2160 = vadd.f32 %v2159, -0.16666654
          %v2161 = vmul.f32 %v2156, %v2160
          %v2162 = vadd.f32 %v2161, 1.0
          %v2163 = vmul.f32 %v2162, %v2147
          %vm2164 = vweird.f32 %v465
          %v2165 = vadd.s32 %v2148, 3
          %v2166 = vand.u32 %v2165, 3
          %vm2167 = vcmp.lt.s32.totalorder %v2166, 2
          %vm2168 = vcmp.eq.s32.totalorder %v2166, 0
          %v2169 = vxor.u32 %v2163, 2147483648
          %v2170 = vsel %vm2168, %v2155, %v2169
          %vm2171 = vcmp.eq.s32.totalorder %v2166, 2
          %v2172 = vxor.u32 %v2155, 2147483648
          %v2173 = vsel %vm2171, %v2172, %v2163
          %v2174 = vsel %vm2167, %v2170, %v2173
          %v2175 = vsel %vm2164, nan, %v2174
          %v2176 = vand.u32 2147483647, %v466
          %vm2177 = vcmp.le.f32.partialorder %v2176, 0.7853982
          %vm2178 = vcmp.lt.s32.totalorder %v466, 0
          %v2179 = vand.u32 %v466, 2139095040
          %v2180 = vshrl.u32 %v2179, 23
          %v2181 = vsub.s32 %v2180, 127
          %v2182 = vand.u32 2147483647, %v466
          %v2183 = vand.u32 %v2182, 8388607
          %v2184 = vor.u32 %v2183, 8388608
          %v2185 = vsub.s32 0, %v2184
          %v2186 = vadd.s32 %v2181, 1
          %vm2187 = vcmp.gt.s32.totalorder %v2186, 0
          %v2188 = vsel %vm2187, %v2186, 0
          %v2189 = vshrl.u32 %v2188, 5
          %v2190 = vand.u32 %v2188, 31
          %v2191 = vsub.s32 32, %v2190
          %v2192 = vshrl.u32 683565275, %v2191
          %v2193 = vshll.u32 683565275, %v2190
          %v2194 = vshrl.u32 2475754826, %v2191
          %v2195 = vor.u32 %v2193, %v2194
          %v2196 = vshll.u32 2475754826, %v2190
          %v2197 = vshrl.u32 2131351028, %v2191
          %v2198 = vor.u32 %v2196, %v2197
          %v2199 = vshll.u32 2131351028, %v2190
          %v2200 = vshrl.u32 2102212464, %v2191
          %v2201 = vor.u32 %v2199, %v2200
          %v2202 = vshll.u32 2102212464, %v2190
          %v2203 = vshrl.u32 920167782, %v2191
          %v2204 = vor.u32 %v2202, %v2203
          %v2205 = vshll.u32 920167782, %v2190
          %v2206 = vshrl.u32 1326507024, %v2191
          %v2207 = vor.u32 %v2205, %v2206
          %vm2208 = vcmp.lt.s32.totalorder %v2189, 1
          %vm2209 = vcmp.lt.s32.totalorder %v2189, 2
          %vm2210 = vcmp.lt.s32.totalorder %v2189, 3
          %vm2211 = vcmp.lt.s32.totalorder %v2189, 4
          %v2212 = vsel %vm2208, %v2192, %v2195
          %v2213 = vsel %vm2211, %v2201, 2102212464
          %v2214 = vsel %vm2210, %v2198, %v2213
          %v2215 = vsel %vm2209, %v2212, %v2214
          %v2216 = vsel %vm2208, %v2195, %v2198
          %v2217 = vsel %vm2211, %v2204, 920167782
          %v2218 = vsel %vm2210, %v2201, %v2217
          %v2219 = vsel %vm2209, %v2216, %v2218
          %v2220 = vsel %vm2208, %v2198, %v2201
          %v2221 = vsel %vm2211, %v2207, 1326507024
          %v2222 = vsel %vm2210, %v2204, %v2221
          %v2223 = vsel %vm2209, %v2220, %v2222
          %v2224 = vshll.u32 %v2184, 8
          %v2225 = vand.u32 %v2224, 65535
          %v2226 = vshrl.u32 %v2224, 16
          %v2227 = vand.u32 %v2223, 65535
          %v2228 = vshrl.u32 %v2223, 16
          %v2229 = vmul.u32 %v2225, %v2227
          %v2230 = vmul.u32 %v2225, %v2228
          %v2231 = vmul.u32 %v2226, %v2227
          %v2232 = vmul.u32 %v2226, %v2228
          %v2233 = vshll.u32 %v2230, 16
          %v2234 = vshrl.u32 %v2230, 16
          %v2235 = vshll.u32 %v2231, 16
          %v2236 = vshrl.u32 %v2231, 16
          %vm2237 = vc.u32 %v2229, %v2233
          %v2238 = vsel %vm2237, 1, 0
          %v2239 = vadd.s32 %v2229, %v2233
          %v2240 = vadd.s32 %v2232, %v2238
          %vm2241 = vc.u32 %v2239, %v2235
          %v2242 = vsel %vm2241, 1, 0
          %v2243 = vadd.s32 %v2239, %v2235
          %v2244 = vadd.s32 %v2240, %v2242
          %v2245 = vadd.s32 %v2244, %v2234
          %v2246 = vadd.s32 %v2245, %v2236
          %v2247 = vand.u32 %v2224, 65535
          %v2248 = vshrl.u32 %v2224, 16
          %v2249 = vand.u32 %v2219, 65535
          %v2250 = vshrl.u32 %v2219, 16
          %v2251 = vmul.u32 %v2247, %v2249
          %v2252 = vmul.u32 %v2247, %v2250
          %v2253 = vmul.u32 %v2248, %v2249
          %v2254 = vmul.u32 %v2248, %v2250
          %v2255 = vshll.u32 %v2252, 16
          %v2256 = vshrl.u32 %v2252, 16
          %v2257 = vshll.u32 %v2253, 16
          %v2258 = vshrl.u32 %v2253, 16
          %vm2259 = vc.u32 %v2251, %v2255
          %v2260 = vsel %vm2259, 1, 0
          %v2261 = vadd.s32 %v2251, %v2255
          %v2262 = vadd.s32 %v2254, %v2260
          %vm2263 = vc.u32 %v2261, %v2257
          %v2264 = vsel %vm2263, 1, 0
          %v2265 = vadd.s32 %v2261, %v2257
          %v2266 = vadd.s32 %v2262, %v2264
          %v2267 = vadd.s32 %v2266, %v2256
          %v2268 = vadd.s32 %v2267, %v2258
          %v2269 = vmul.u32 %v2224, %v2215
          %v2270 = vadd.s32 %v2246, %v2265
          %vm2271 = vc.u32 %v2246, %v2265
          %v2272 = vadd.s32 %v2268, 1
          %v2273 = vsel %vm2271, %v2272, %v2268
          %v2274 = vadd.s32 %v2269, %v2273
          %v2275 = vadd.s32 %v2274, 536870912
          %v2276 = vshrl.u32 %v2275, 30
          %v2277 = vshll.u32 %v2276, 30
          %v2278 = vsub.s32 %v2274, %v2277
          %vm2279 = vcmp.lt.s32.totalorder %v2278, 0
          %v2280 = vsub.s32 0, %v2278
          %v2281 = vsel %vm2279, %v2280, %v2278
          %v2282 = vclz %v2281
          %v2283 = vsub.s32 %v2282, 2
          %vm2284 = vcmp.gt.s32.totalorder 0, %v2283
          %v2285 = vsel %vm2284, 0, %v2283
          %v2286 = vsub.s32 32, %v2285
          %v2287 = vshll.u32 %v2278, %v2285
          %v2288 = vshrl.u32 %v2270, %v2286
          %v2289 = vor.u32 %v2287, %v2288
          %v2290 = vsub.s32 4294967266, %v2285
          %v2291 = vadd.s32 %v2290, 127
          %v2292 = vshll.u32 %v2291, 23
          %v2293 = vor.u32 4788187, %v2292
          %v2294 = vand.u32 2147483647, %v2293
          %v2296 = vcvt.s32.f32 %v2289
          %v2297 = vmul.f32 %v2296, %v2294
          %v2298 = vxor.u32 %v2297, 2147483648
          %v2299 = vsel %vm2178, %v2298, %v2297
          %v2300 = vsub.s32 4, %v2276
          %v2301 = vsel %vm2178, %v2300, %v2276
          %v2302 = vsel %vm2177, %v466, %v2299
          %v2303 = vsel %vm2177, 0, %v2301
          %v2304 = vmul.f32 %v2302, %v2302
          %v2305 = vmul.f32 %v2304, -0.001358992
          %v2306 = vadd.f32 %v2305, 0.041655596
          %v2307 = vmul.f32 %v2304, %v2306
          %v2308 = vadd.f32 %v2307, -0.4999988
          %v2309 = vmul.f32 %v2304, %v2308
          %v2310 = vadd.f32 1.0, %v2309
          %v2311 = vmul.f32 %v2302, %v2302
          %v2312 = vmul.f32 %v2311, -0.00019511016
          %v2313 = vadd.f32 %v2312, 0.008332121
          %v2314 = vmul.f32 %v2311, %v2313
          %v2315 = vadd.f32 %v2314, -0.16666654
          %v2316 = vmul.f32 %v2311, %v2315
          %v2317 = vadd.f32 %v2316, 1.0
          %v2318 = vmul.f32 %v2317, %v2302
          %vm2319 = vweird.f32 %v466
          %v2320 = vadd.s32 %v2303, 3
          %v2321 = vand.u32 %v2320, 3
          %vm2322 = vcmp.lt.s32.totalorder %v2321, 2
          %vm2323 = vcmp.eq.s32.totalorder %v2321, 0
          %v2324 = vxor.u32 %v2318, 2147483648
          %v2325 = vsel %vm2323, %v2310, %v2324
          %vm2326 = vcmp.eq.s32.totalorder %v2321, 2
          %v2327 = vxor.u32 %v2310, 2147483648
          %v2328 = vsel %vm2326, %v2327, %v2318
          %v2329 = vsel %vm2322, %v2325, %v2328
          %v2330 = vsel %vm2319, nan, %v2329
          %v2331 = vand.u32 2147483647, %v467
          %vm2332 = vcmp.le.f32.partialorder %v2331, 0.7853982
          %vm2333 = vcmp.lt.s32.totalorder %v467, 0
          %v2334 = vand.u32 %v467, 2139095040
          %v2335 = vshrl.u32 %v2334, 23
          %v2336 = vsub.s32 %v2335, 127
          %v2337 = vand.u32 2147483647, %v467
          %v2338 = vand.u32 %v2337, 8388607
          %v2339 = vor.u32 %v2338, 8388608
          %v2340 = vsub.s32 0, %v2339
          %v2341 = vadd.s32 %v2336, 1
          %vm2342 = vcmp.gt.s32.totalorder %v2341, 0
          %v2343 = vsel %vm2342, %v2341, 0
          %v2344 = vshrl.u32 %v2343, 5
          %v2345 = vand.u32 %v2343, 31
          %v2346 = vsub.s32 32, %v2345
          %v2347 = vshrl.u32 683565275, %v2346
          %v2348 = vshll.u32 683565275, %v2345
          %v2349 = vshrl.u32 2475754826, %v2346
          %v2350 = vor.u32 %v2348, %v2349
          %v2351 = vshll.u32 2475754826, %v2345
          %v2352 = vshrl.u32 2131351028, %v2346
          %v2353 = vor.u32 %v2351, %v2352
          %v2354 = vshll.u32 2131351028, %v2345
          %v2355 = vshrl.u32 2102212464, %v2346
          %v2356 = vor.u32 %v2354, %v2355
          %v2357 = vshll.u32 2102212464, %v2345
          %v2358 = vshrl.u32 920167782, %v2346
          %v2359 = vor.u32 %v2357, %v2358
          %v2360 = vshll.u32 920167782, %v2345
          %v2361 = vshrl.u32 1326507024, %v2346
          %v2362 = vor.u32 %v2360, %v2361
          %vm2363 = vcmp.lt.s32.totalorder %v2344, 1
          %vm2364 = vcmp.lt.s32.totalorder %v2344, 2
          %vm2365 = vcmp.lt.s32.totalorder %v2344, 3
          %vm2366 = vcmp.lt.s32.totalorder %v2344, 4
          %v2367 = vsel %vm2363, %v2347, %v2350
          %v2368 = vsel %vm2366, %v2356, 2102212464
          %v2369 = vsel %vm2365, %v2353, %v2368
          %v2370 = vsel %vm2364, %v2367, %v2369
          %v2371 = vsel %vm2363, %v2350, %v2353
          %v2372 = vsel %vm2366, %v2359, 920167782
          %v2373 = vsel %vm2365, %v2356, %v2372
          %v2374 = vsel %vm2364, %v2371, %v2373
          %v2375 = vsel %vm2363, %v2353, %v2356
          %v2376 = vsel %vm2366, %v2362, 1326507024
          %v2377 = vsel %vm2365, %v2359, %v2376
          %v2378 = vsel %vm2364, %v2375, %v2377
          %v2379 = vshll.u32 %v2339, 8
          %v2380 = vand.u32 %v2379, 65535
          %v2381 = vshrl.u32 %v2379, 16
          %v2382 = vand.u32 %v2378, 65535
          %v2383 = vshrl.u32 %v2378, 16
          %v2384 = vmul.u32 %v2380, %v2382
          %v2385 = vmul.u32 %v2380, %v2383
          %v2386 = vmul.u32 %v2381, %v2382
          %v2387 = vmul.u32 %v2381, %v2383
          %v2388 = vshll.u32 %v2385, 16
          %v2389 = vshrl.u32 %v2385, 16
          %v2390 = vshll.u32 %v2386, 16
          %v2391 = vshrl.u32 %v2386, 16
          %vm2392 = vc.u32 %v2384, %v2388
          %v2393 = vsel %vm2392, 1, 0
          %v2394 = vadd.s32 %v2384, %v2388
          %v2395 = vadd.s32 %v2387, %v2393
          %vm2396 = vc.u32 %v2394, %v2390
          %v2397 = vsel %vm2396, 1, 0
          %v2398 = vadd.s32 %v2394, %v2390
          %v2399 = vadd.s32 %v2395, %v2397
          %v2400 = vadd.s32 %v2399, %v2389
          %v2401 = vadd.s32 %v2400, %v2391
          %v2402 = vand.u32 %v2379, 65535
          %v2403 = vshrl.u32 %v2379, 16
          %v2404 = vand.u32 %v2374, 65535
          %v2405 = vshrl.u32 %v2374, 16
          %v2406 = vmul.u32 %v2402, %v2404
          %v2407 = vmul.u32 %v2402, %v2405
          %v2408 = vmul.u32 %v2403, %v2404
          %v2409 = vmul.u32 %v2403, %v2405
          %v2410 = vshll.u32 %v2407, 16
          %v2411 = vshrl.u32 %v2407, 16
          %v2412 = vshll.u32 %v2408, 16
          %v2413 = vshrl.u32 %v2408, 16
          %vm2414 = vc.u32 %v2406, %v2410
          %v2415 = vsel %vm2414, 1, 0
          %v2416 = vadd.s32 %v2406, %v2410
          %v2417 = vadd.s32 %v2409, %v2415
          %vm2418 = vc.u32 %v2416, %v2412
          %v2419 = vsel %vm2418, 1, 0
          %v2420 = vadd.s32 %v2416, %v2412
          %v2421 = vadd.s32 %v2417, %v2419
          %v2422 = vadd.s32 %v2421, %v2411
          %v2423 = vadd.s32 %v2422, %v2413
          %v2424 = vmul.u32 %v2379, %v2370
          %v2425 = vadd.s32 %v2401, %v2420
          %vm2426 = vc.u32 %v2401, %v2420
          %v2427 = vadd.s32 %v2423, 1
          %v2428 = vsel %vm2426, %v2427, %v2423
          %v2429 = vadd.s32 %v2424, %v2428
          %v2430 = vadd.s32 %v2429, 536870912
          %v2431 = vshrl.u32 %v2430, 30
          %v2432 = vshll.u32 %v2431, 30
          %v2433 = vsub.s32 %v2429, %v2432
          %vm2434 = vcmp.lt.s32.totalorder %v2433, 0
          %v2435 = vsub.s32 0, %v2433
          %v2436 = vsel %vm2434, %v2435, %v2433
          %v2437 = vclz %v2436
          %v2438 = vsub.s32 %v2437, 2
          %vm2439 = vcmp.gt.s32.totalorder 0, %v2438
          %v2440 = vsel %vm2439, 0, %v2438
          %v2441 = vsub.s32 32, %v2440
          %v2442 = vshll.u32 %v2433, %v2440
          %v2443 = vshrl.u32 %v2425, %v2441
          %v2444 = vor.u32 %v2442, %v2443
          %v2445 = vsub.s32 4294967266, %v2440
          %v2446 = vadd.s32 %v2445, 127
          %v2447 = vshll.u32 %v2446, 23
          %v2448 = vor.u32 4788187, %v2447
          %v2449 = vand.u32 2147483647, %v2448
          %v2451 = vcvt.s32.f32 %v2444
          %v2452 = vmul.f32 %v2451, %v2449
          %v2453 = vxor.u32 %v2452, 2147483648
          %v2454 = vsel %vm2333, %v2453, %v2452
          %v2455 = vsub.s32 4, %v2431
          %v2456 = vsel %vm2333, %v2455, %v2431
          %v2457 = vsel %vm2332, %v467, %v2454
          %v2458 = vsel %vm2332, 0, %v2456
          %v2459 = vmul.f32 %v2457, %v2457
          %v2460 = vmul.f32 %v2459, -0.001358992
          %v2461 = vadd.f32 %v2460, 0.041655596
          %v2462 = vmul.f32 %v2459, %v2461
          %v2463 = vadd.f32 %v2462, -0.4999988
          %v2464 = vmul.f32 %v2459, %v2463
          %v2465 = vadd.f32 1.0, %v2464
          %v2466 = vmul.f32 %v2457, %v2457
          %v2467 = vmul.f32 %v2466, -0.00019511016
          %v2468 = vadd.f32 %v2467, 0.008332121
          %v2469 = vmul.f32 %v2466, %v2468
          %v2470 = vadd.f32 %v2469, -0.16666654
          %v2471 = vmul.f32 %v2466, %v2470
          %v2472 = vadd.f32 %v2471, 1.0
          %v2473 = vmul.f32 %v2472, %v2457
          %vm2474 = vweird.f32 %v467
          %v2475 = vadd.s32 %v2458, 3
          %v2476 = vand.u32 %v2475, 3
          %vm2477 = vcmp.lt.s32.totalorder %v2476, 2
          %vm2478 = vcmp.eq.s32.totalorder %v2476, 0
          %v2479 = vxor.u32 %v2473, 2147483648
          %v2480 = vsel %vm2478, %v2465, %v2479
          %vm2481 = vcmp.eq.s32.totalorder %v2476, 2
          %v2482 = vxor.u32 %v2465, 2147483648
          %v2483 = vsel %vm2481, %v2482, %v2473
          %v2484 = vsel %vm2477, %v2480, %v2483
          %v2485 = vsel %vm2474, nan, %v2484
          %v2486 = vand.u32 2147483647, %v468
          %vm2487 = vcmp.le.f32.partialorder %v2486, 0.7853982
          %vm2488 = vcmp.lt.s32.totalorder %v468, 0
          %v2489 = vand.u32 %v468, 2139095040
          %v2490 = vshrl.u32 %v2489, 23
          %v2491 = vsub.s32 %v2490, 127
          %v2492 = vand.u32 2147483647, %v468
          %v2493 = vand.u32 %v2492, 8388607
          %v2494 = vor.u32 %v2493, 8388608
          %v2495 = vsub.s32 0, %v2494
          %v2496 = vadd.s32 %v2491, 1
          %vm2497 = vcmp.gt.s32.totalorder %v2496, 0
          %v2498 = vsel %vm2497, %v2496, 0
          %v2499 = vshrl.u32 %v2498, 5
          %v2500 = vand.u32 %v2498, 31
          %v2501 = vsub.s32 32, %v2500
          %v2502 = vshrl.u32 683565275, %v2501
          %v2503 = vshll.u32 683565275, %v2500
          %v2504 = vshrl.u32 2475754826, %v2501
          %v2505 = vor.u32 %v2503, %v2504
          %v2506 = vshll.u32 2475754826, %v2500
          %v2507 = vshrl.u32 2131351028, %v2501
          %v2508 = vor.u32 %v2506, %v2507
          %v2509 = vshll.u32 2131351028, %v2500
          %v2510 = vshrl.u32 2102212464, %v2501
          %v2511 = vor.u32 %v2509, %v2510
          %v2512 = vshll.u32 2102212464, %v2500
          %v2513 = vshrl.u32 920167782, %v2501
          %v2514 = vor.u32 %v2512, %v2513
          %v2515 = vshll.u32 920167782, %v2500
          %v2516 = vshrl.u32 1326507024, %v2501
          %v2517 = vor.u32 %v2515, %v2516
          %vm2518 = vcmp.lt.s32.totalorder %v2499, 1
          %vm2519 = vcmp.lt.s32.totalorder %v2499, 2
          %vm2520 = vcmp.lt.s32.totalorder %v2499, 3
          %vm2521 = vcmp.lt.s32.totalorder %v2499, 4
          %v2522 = vsel %vm2518, %v2502, %v2505
          %v2523 = vsel %vm2521, %v2511, 2102212464
          %v2524 = vsel %vm2520, %v2508, %v2523
          %v2525 = vsel %vm2519, %v2522, %v2524
          %v2526 = vsel %vm2518, %v2505, %v2508
          %v2527 = vsel %vm2521, %v2514, 920167782
          %v2528 = vsel %vm2520, %v2511, %v2527
          %v2529 = vsel %vm2519, %v2526, %v2528
          %v2530 = vsel %vm2518, %v2508, %v2511
          %v2531 = vsel %vm2521, %v2517, 1326507024
          %v2532 = vsel %vm2520, %v2514, %v2531
          %v2533 = vsel %vm2519, %v2530, %v2532
          %v2534 = vshll.u32 %v2494, 8
          %v2535 = vand.u32 %v2534, 65535
          %v2536 = vshrl.u32 %v2534, 16
          %v2537 = vand.u32 %v2533, 65535
          %v2538 = vshrl.u32 %v2533, 16
          %v2539 = vmul.u32 %v2535, %v2537
          %v2540 = vmul.u32 %v2535, %v2538
          %v2541 = vmul.u32 %v2536, %v2537
          %v2542 = vmul.u32 %v2536, %v2538
          %v2543 = vshll.u32 %v2540, 16
          %v2544 = vshrl.u32 %v2540, 16
          %v2545 = vshll.u32 %v2541, 16
          %v2546 = vshrl.u32 %v2541, 16
          %vm2547 = vc.u32 %v2539, %v2543
          %v2548 = vsel %vm2547, 1, 0
          %v2549 = vadd.s32 %v2539, %v2543
          %v2550 = vadd.s32 %v2542, %v2548
          %vm2551 = vc.u32 %v2549, %v2545
          %v2552 = vsel %vm2551, 1, 0
          %v2553 = vadd.s32 %v2549, %v2545
          %v2554 = vadd.s32 %v2550, %v2552
          %v2555 = vadd.s32 %v2554, %v2544
          %v2556 = vadd.s32 %v2555, %v2546
          %v2557 = vand.u32 %v2534, 65535
          %v2558 = vshrl.u32 %v2534, 16
          %v2559 = vand.u32 %v2529, 65535
          %v2560 = vshrl.u32 %v2529, 16
          %v2561 = vmul.u32 %v2557, %v2559
          %v2562 = vmul.u32 %v2557, %v2560
          %v2563 = vmul.u32 %v2558, %v2559
          %v2564 = vmul.u32 %v2558, %v2560
          %v2565 = vshll.u32 %v2562, 16
          %v2566 = vshrl.u32 %v2562, 16
          %v2567 = vshll.u32 %v2563, 16
          %v2568 = vshrl.u32 %v2563, 16
          %vm2569 = vc.u32 %v2561, %v2565
          %v2570 = vsel %vm2569, 1, 0
          %v2571 = vadd.s32 %v2561, %v2565
          %v2572 = vadd.s32 %v2564, %v2570
          %vm2573 = vc.u32 %v2571, %v2567
          %v2574 = vsel %vm2573, 1, 0
          %v2575 = vadd.s32 %v2571, %v2567
          %v2576 = vadd.s32 %v2572, %v2574
          %v2577 = vadd.s32 %v2576, %v2566
          %v2578 = vadd.s32 %v2577, %v2568
          %v2579 = vmul.u32 %v2534, %v2525
          %v2580 = vadd.s32 %v2556, %v2575
          %vm2581 = vc.u32 %v2556, %v2575
          %v2582 = vadd.s32 %v2578, 1
          %v2583 = vsel %vm2581, %v2582, %v2578
          %v2584 = vadd.s32 %v2579, %v2583
          %v2585 = vadd.s32 %v2584, 536870912
          %v2586 = vshrl.u32 %v2585, 30
          %v2587 = vshll.u32 %v2586, 30
          %v2588 = vsub.s32 %v2584, %v2587
          %vm2589 = vcmp.lt.s32.totalorder %v2588, 0
          %v2590 = vsub.s32 0, %v2588
          %v2591 = vsel %vm2589, %v2590, %v2588
          %v2592 = vclz %v2591
          %v2593 = vsub.s32 %v2592, 2
          %vm2594 = vcmp.gt.s32.totalorder 0, %v2593
          %v2595 = vsel %vm2594, 0, %v2593
          %v2596 = vsub.s32 32, %v2595
          %v2597 = vshll.u32 %v2588, %v2595
          %v2598 = vshrl.u32 %v2580, %v2596
          %v2599 = vor.u32 %v2597, %v2598
          %v2600 = vsub.s32 4294967266, %v2595
          %v2601 = vadd.s32 %v2600, 127
          %v2602 = vshll.u32 %v2601, 23
          %v2603 = vor.u32 4788187, %v2602
          %v2604 = vand.u32 2147483647, %v2603
          %v2606 = vcvt.s32.f32 %v2599
          %v2607 = vmul.f32 %v2606, %v2604
          %v2608 = vxor.u32 %v2607, 2147483648
          %v2609 = vsel %vm2488, %v2608, %v2607
          %v2610 = vsub.s32 4, %v2586
          %v2611 = vsel %vm2488, %v2610, %v2586
          %v2612 = vsel %vm2487, %v468, %v2609
          %v2613 = vsel %vm2487, 0, %v2611
          %v2614 = vmul.f32 %v2612, %v2612
          %v2615 = vmul.f32 %v2614, -0.001358992
          %v2616 = vadd.f32 %v2615, 0.041655596
          %v2617 = vmul.f32 %v2614, %v2616
          %v2618 = vadd.f32 %v2617, -0.4999988
          %v2619 = vmul.f32 %v2614, %v2618
          %v2620 = vadd.f32 1.0, %v2619
          %v2621 = vmul.f32 %v2612, %v2612
          %v2622 = vmul.f32 %v2621, -0.00019511016
          %v2623 = vadd.f32 %v2622, 0.008332121
          %v2624 = vmul.f32 %v2621, %v2623
          %v2625 = vadd.f32 %v2624, -0.16666654
          %v2626 = vmul.f32 %v2621, %v2625
          %v2627 = vadd.f32 %v2626, 1.0
          %v2628 = vmul.f32 %v2627, %v2612
          %vm2629 = vweird.f32 %v468
          %v2630 = vadd.s32 %v2613, 3
          %v2631 = vand.u32 %v2630, 3
          %vm2632 = vcmp.lt.s32.totalorder %v2631, 2
          %vm2633 = vcmp.eq.s32.totalorder %v2631, 0
          %v2634 = vxor.u32 %v2628, 2147483648
          %v2635 = vsel %vm2633, %v2620, %v2634
          %vm2636 = vcmp.eq.s32.totalorder %v2631, 2
          %v2637 = vxor.u32 %v2620, 2147483648
          %v2638 = vsel %vm2636, %v2637, %v2628
          %v2639 = vsel %vm2632, %v2635, %v2638
          %v2640 = vsel %vm2629, nan, %v2639
          %v2641 = vand.u32 2147483647, %v469
          %vm2642 = vcmp.le.f32.partialorder %v2641, 0.7853982
          %vm2643 = vcmp.lt.s32.totalorder %v469, 0
          %v2644 = vand.u32 %v469, 2139095040
          %v2645 = vshrl.u32 %v2644, 23
          %v2646 = vsub.s32 %v2645, 127
          %v2647 = vand.u32 2147483647, %v469
          %v2648 = vand.u32 %v2647, 8388607
          %v2649 = vor.u32 %v2648, 8388608
          %v2650 = vsub.s32 0, %v2649
          %v2651 = vadd.s32 %v2646, 1
          %vm2652 = vcmp.gt.s32.totalorder %v2651, 0
          %v2653 = vsel %vm2652, %v2651, 0
          %v2654 = vshrl.u32 %v2653, 5
          %v2655 = vand.u32 %v2653, 31
          %v2656 = vsub.s32 32, %v2655
          %v2657 = vshrl.u32 683565275, %v2656
          %v2658 = vshll.u32 683565275, %v2655
          %v2659 = vshrl.u32 2475754826, %v2656
          %v2660 = vor.u32 %v2658, %v2659
          %v2661 = vshll.u32 2475754826, %v2655
          %v2662 = vshrl.u32 2131351028, %v2656
          %v2663 = vor.u32 %v2661, %v2662
          %v2664 = vshll.u32 2131351028, %v2655
          %v2665 = vshrl.u32 2102212464, %v2656
          %v2666 = vor.u32 %v2664, %v2665
          %v2667 = vshll.u32 2102212464, %v2655
          %v2668 = vshrl.u32 920167782, %v2656
          %v2669 = vor.u32 %v2667, %v2668
          %v2670 = vshll.u32 920167782, %v2655
          %v2671 = vshrl.u32 1326507024, %v2656
          %v2672 = vor.u32 %v2670, %v2671
          %vm2673 = vcmp.lt.s32.totalorder %v2654, 1
          %vm2674 = vcmp.lt.s32.totalorder %v2654, 2
          %vm2675 = vcmp.lt.s32.totalorder %v2654, 3
          %vm2676 = vcmp.lt.s32.totalorder %v2654, 4
          %v2677 = vsel %vm2673, %v2657, %v2660
          %v2678 = vsel %vm2676, %v2666, 2102212464
          %v2679 = vsel %vm2675, %v2663, %v2678
          %v2680 = vsel %vm2674, %v2677, %v2679
          %v2681 = vsel %vm2673, %v2660, %v2663
          %v2682 = vsel %vm2676, %v2669, 920167782
          %v2683 = vsel %vm2675, %v2666, %v2682
          %v2684 = vsel %vm2674, %v2681, %v2683
          %v2685 = vsel %vm2673, %v2663, %v2666
          %v2686 = vsel %vm2676, %v2672, 1326507024
          %v2687 = vsel %vm2675, %v2669, %v2686
          %v2688 = vsel %vm2674, %v2685, %v2687
          %v2689 = vshll.u32 %v2649, 8
          %v2690 = vand.u32 %v2689, 65535
          %v2691 = vshrl.u32 %v2689, 16
          %v2692 = vand.u32 %v2688, 65535
          %v2693 = vshrl.u32 %v2688, 16
          %v2694 = vmul.u32 %v2690, %v2692
          %v2695 = vmul.u32 %v2690, %v2693
          %v2696 = vmul.u32 %v2691, %v2692
          %v2697 = vmul.u32 %v2691, %v2693
          %v2698 = vshll.u32 %v2695, 16
          %v2699 = vshrl.u32 %v2695, 16
          %v2700 = vshll.u32 %v2696, 16
          %v2701 = vshrl.u32 %v2696, 16
          %vm2702 = vc.u32 %v2694, %v2698
          %v2703 = vsel %vm2702, 1, 0
          %v2704 = vadd.s32 %v2694, %v2698
          %v2705 = vadd.s32 %v2697, %v2703
          %vm2706 = vc.u32 %v2704, %v2700
          %v2707 = vsel %vm2706, 1, 0
          %v2708 = vadd.s32 %v2704, %v2700
          %v2709 = vadd.s32 %v2705, %v2707
          %v2710 = vadd.s32 %v2709, %v2699
          %v2711 = vadd.s32 %v2710, %v2701
          %v2712 = vand.u32 %v2689, 65535
          %v2713 = vshrl.u32 %v2689, 16
          %v2714 = vand.u32 %v2684, 65535
          %v2715 = vshrl.u32 %v2684, 16
          %v2716 = vmul.u32 %v2712, %v2714
          %v2717 = vmul.u32 %v2712, %v2715
          %v2718 = vmul.u32 %v2713, %v2714
          %v2719 = vmul.u32 %v2713, %v2715
          %v2720 = vshll.u32 %v2717, 16
          %v2721 = vshrl.u32 %v2717, 16
          %v2722 = vshll.u32 %v2718, 16
          %v2723 = vshrl.u32 %v2718, 16
          %vm2724 = vc.u32 %v2716, %v2720
          %v2725 = vsel %vm2724, 1, 0
          %v2726 = vadd.s32 %v2716, %v2720
          %v2727 = vadd.s32 %v2719, %v2725
          %vm2728 = vc.u32 %v2726, %v2722
          %v2729 = vsel %vm2728, 1, 0
          %v2730 = vadd.s32 %v2726, %v2722
          %v2731 = vadd.s32 %v2727, %v2729
          %v2732 = vadd.s32 %v2731, %v2721
          %v2733 = vadd.s32 %v2732, %v2723
          %v2734 = vmul.u32 %v2689, %v2680
          %v2735 = vadd.s32 %v2711, %v2730
          %vm2736 = vc.u32 %v2711, %v2730
          %v2737 = vadd.s32 %v2733, 1
          %v2738 = vsel %vm2736, %v2737, %v2733
          %v2739 = vadd.s32 %v2734, %v2738
          %v2740 = vadd.s32 %v2739, 536870912
          %v2741 = vshrl.u32 %v2740, 30
          %v2742 = vshll.u32 %v2741, 30
          %v2743 = vsub.s32 %v2739, %v2742
          %vm2744 = vcmp.lt.s32.totalorder %v2743, 0
          %v2745 = vsub.s32 0, %v2743
          %v2746 = vsel %vm2744, %v2745, %v2743
          %v2747 = vclz %v2746
          %v2748 = vsub.s32 %v2747, 2
          %vm2749 = vcmp.gt.s32.totalorder 0, %v2748
          %v2750 = vsel %vm2749, 0, %v2748
          %v2751 = vsub.s32 32, %v2750
          %v2752 = vshll.u32 %v2743, %v2750
          %v2753 = vshrl.u32 %v2735, %v2751
          %v2754 = vor.u32 %v2752, %v2753
          %v2755 = vsub.s32 4294967266, %v2750
          %v2756 = vadd.s32 %v2755, 127
          %v2757 = vshll.u32 %v2756, 23
          %v2758 = vor.u32 4788187, %v2757
          %v2759 = vand.u32 2147483647, %v2758
          %v2761 = vcvt.s32.f32 %v2754
          %v2762 = vmul.f32 %v2761, %v2759
          %v2763 = vxor.u32 %v2762, 2147483648
          %v2764 = vsel %vm2643, %v2763, %v2762
          %v2765 = vsub.s32 4, %v2741
          %v2766 = vsel %vm2643, %v2765, %v2741
          %v2767 = vsel %vm2642, %v469, %v2764
          %v2768 = vsel %vm2642, 0, %v2766
          %v2769 = vmul.f32 %v2767, %v2767
          %v2770 = vmul.f32 %v2769, -0.001358992
          %v2771 = vadd.f32 %v2770, 0.041655596
          %v2772 = vmul.f32 %v2769, %v2771
          %v2773 = vadd.f32 %v2772, -0.4999988
          %v2774 = vmul.f32 %v2769, %v2773
          %v2775 = vadd.f32 1.0, %v2774
          %v2776 = vmul.f32 %v2767, %v2767
          %v2777 = vmul.f32 %v2776, -0.00019511016
          %v2778 = vadd.f32 %v2777, 0.008332121
          %v2779 = vmul.f32 %v2776, %v2778
          %v2780 = vadd.f32 %v2779, -0.16666654
          %v2781 = vmul.f32 %v2776, %v2780
          %v2782 = vadd.f32 %v2781, 1.0
          %v2783 = vmul.f32 %v2782, %v2767
          %vm2784 = vweird.f32 %v469
          %v2785 = vadd.s32 %v2768, 3
          %v2786 = vand.u32 %v2785, 3
          %vm2787 = vcmp.lt.s32.totalorder %v2786, 2
          %vm2788 = vcmp.eq.s32.totalorder %v2786, 0
          %v2789 = vxor.u32 %v2783, 2147483648
          %v2790 = vsel %vm2788, %v2775, %v2789
          %vm2791 = vcmp.eq.s32.totalorder %v2786, 2
          %v2792 = vxor.u32 %v2775, 2147483648
          %v2793 = vsel %vm2791, %v2792, %v2783
          %v2794 = vsel %vm2787, %v2790, %v2793
          %v2795 = vsel %vm2784, nan, %v2794
          %v2796 = vand.u32 2147483647, %v470
          %vm2797 = vcmp.le.f32.partialorder %v2796, 0.7853982
          %vm2798 = vcmp.lt.s32.totalorder %v470, 0
          %v2799 = vand.u32 %v470, 2139095040
          %v2800 = vshrl.u32 %v2799, 23
          %v2801 = vsub.s32 %v2800, 127
          %v2802 = vand.u32 2147483647, %v470
          %v2803 = vand.u32 %v2802, 8388607
          %v2804 = vor.u32 %v2803, 8388608
          %v2805 = vsub.s32 0, %v2804
          %v2806 = vadd.s32 %v2801, 1
          %vm2807 = vcmp.gt.s32.totalorder %v2806, 0
          %v2808 = vsel %vm2807, %v2806, 0
          %v2809 = vshrl.u32 %v2808, 5
          %v2810 = vand.u32 %v2808, 31
          %v2811 = vsub.s32 32, %v2810
          %v2812 = vshrl.u32 683565275, %v2811
          %v2813 = vshll.u32 683565275, %v2810
          %v2814 = vshrl.u32 2475754826, %v2811
          %v2815 = vor.u32 %v2813, %v2814
          %v2816 = vshll.u32 2475754826, %v2810
          %v2817 = vshrl.u32 2131351028, %v2811
          %v2818 = vor.u32 %v2816, %v2817
          %v2819 = vshll.u32 2131351028, %v2810
          %v2820 = vshrl.u32 2102212464, %v2811
          %v2821 = vor.u32 %v2819, %v2820
          %v2822 = vshll.u32 2102212464, %v2810
          %v2823 = vshrl.u32 920167782, %v2811
          %v2824 = vor.u32 %v2822, %v2823
          %v2825 = vshll.u32 920167782, %v2810
          %v2826 = vshrl.u32 1326507024, %v2811
          %v2827 = vor.u32 %v2825, %v2826
          %vm2828 = vcmp.lt.s32.totalorder %v2809, 1
          %vm2829 = vcmp.lt.s32.totalorder %v2809, 2
          %vm2830 = vcmp.lt.s32.totalorder %v2809, 3
          %vm2831 = vcmp.lt.s32.totalorder %v2809, 4
          %v2832 = vsel %vm2828, %v2812, %v2815
          %v2833 = vsel %vm2831, %v2821, 2102212464
          %v2834 = vsel %vm2830, %v2818, %v2833
          %v2835 = vsel %vm2829, %v2832, %v2834
          %v2836 = vsel %vm2828, %v2815, %v2818
          %v2837 = vsel %vm2831, %v2824, 920167782
          %v2838 = vsel %vm2830, %v2821, %v2837
          %v2839 = vsel %vm2829, %v2836, %v2838
          %v2840 = vsel %vm2828, %v2818, %v2821
          %v2841 = vsel %vm2831, %v2827, 1326507024
          %v2842 = vsel %vm2830, %v2824, %v2841
          %v2843 = vsel %vm2829, %v2840, %v2842
          %v2844 = vshll.u32 %v2804, 8
          %v2845 = vand.u32 %v2844, 65535
          %v2846 = vshrl.u32 %v2844, 16
          %v2847 = vand.u32 %v2843, 65535
          %v2848 = vshrl.u32 %v2843, 16
          %v2849 = vmul.u32 %v2845, %v2847
          %v2850 = vmul.u32 %v2845, %v2848
          %v2851 = vmul.u32 %v2846, %v2847
          %v2852 = vmul.u32 %v2846, %v2848
          %v2853 = vshll.u32 %v2850, 16
          %v2854 = vshrl.u32 %v2850, 16
          %v2855 = vshll.u32 %v2851, 16
          %v2856 = vshrl.u32 %v2851, 16
          %vm2857 = vc.u32 %v2849, %v2853
          %v2858 = vsel %vm2857, 1, 0
          %v2859 = vadd.s32 %v2849, %v2853
          %v2860 = vadd.s32 %v2852, %v2858
          %vm2861 = vc.u32 %v2859, %v2855
          %v2862 = vsel %vm2861, 1, 0
          %v2863 = vadd.s32 %v2859, %v2855
          %v2864 = vadd.s32 %v2860, %v2862
          %v2865 = vadd.s32 %v2864, %v2854
          %v2866 = vadd.s32 %v2865, %v2856
          %v2867 = vand.u32 %v2844, 65535
          %v2868 = vshrl.u32 %v2844, 16
          %v2869 = vand.u32 %v2839, 65535
          %v2870 = vshrl.u32 %v2839, 16
          %v2871 = vmul.u32 %v2867, %v2869
          %v2872 = vmul.u32 %v2867, %v2870
          %v2873 = vmul.u32 %v2868, %v2869
          %v2874 = vmul.u32 %v2868, %v2870
          %v2875 = vshll.u32 %v2872, 16
          %v2876 = vshrl.u32 %v2872, 16
          %v2877 = vshll.u32 %v2873, 16
          %v2878 = vshrl.u32 %v2873, 16
          %vm2879 = vc.u32 %v2871, %v2875
          %v2880 = vsel %vm2879, 1, 0
          %v2881 = vadd.s32 %v2871, %v2875
          %v2882 = vadd.s32 %v2874, %v2880
          %vm2883 = vc.u32 %v2881, %v2877
          %v2884 = vsel %vm2883, 1, 0
          %v2885 = vadd.s32 %v2881, %v2877
          %v2886 = vadd.s32 %v2882, %v2884
          %v2887 = vadd.s32 %v2886, %v2876
          %v2888 = vadd.s32 %v2887, %v2878
          %v2889 = vmul.u32 %v2844, %v2835
          %v2890 = vadd.s32 %v2866, %v2885
          %vm2891 = vc.u32 %v2866, %v2885
          %v2892 = vadd.s32 %v2888, 1
          %v2893 = vsel %vm2891, %v2892, %v2888
          %v2894 = vadd.s32 %v2889, %v2893
          %v2895 = vadd.s32 %v2894, 536870912
          %v2896 = vshrl.u32 %v2895, 30
          %v2897 = vshll.u32 %v2896, 30
          %v2898 = vsub.s32 %v2894, %v2897
          %vm2899 = vcmp.lt.s32.totalorder %v2898, 0
          %v2900 = vsub.s32 0, %v2898
          %v2901 = vsel %vm2899, %v2900, %v2898
          %v2902 = vclz %v2901
          %v2903 = vsub.s32 %v2902, 2
          %vm2904 = vcmp.gt.s32.totalorder 0, %v2903
          %v2905 = vsel %vm2904, 0, %v2903
          %v2906 = vsub.s32 32, %v2905
          %v2907 = vshll.u32 %v2898, %v2905
          %v2908 = vshrl.u32 %v2890, %v2906
          %v2909 = vor.u32 %v2907, %v2908
          %v2910 = vsub.s32 4294967266, %v2905
          %v2911 = vadd.s32 %v2910, 127
          %v2912 = vshll.u32 %v2911, 23
          %v2913 = vor.u32 4788187, %v2912
          %v2914 = vand.u32 2147483647, %v2913
          %v2916 = vcvt.s32.f32 %v2909
          %v2917 = vmul.f32 %v2916, %v2914
          %v2918 = vxor.u32 %v2917, 2147483648
          %v2919 = vsel %vm2798, %v2918, %v2917
          %v2920 = vsub.s32 4, %v2896
          %v2921 = vsel %vm2798, %v2920, %v2896
          %v2922 = vsel %vm2797, %v470, %v2919
          %v2923 = vsel %vm2797, 0, %v2921
          %v2924 = vmul.f32 %v2922, %v2922
          %v2925 = vmul.f32 %v2924, -0.001358992
          %v2926 = vadd.f32 %v2925, 0.041655596
          %v2927 = vmul.f32 %v2924, %v2926
          %v2928 = vadd.f32 %v2927, -0.4999988
          %v2929 = vmul.f32 %v2924, %v2928
          %v2930 = vadd.f32 1.0, %v2929
          %v2931 = vmul.f32 %v2922, %v2922
          %v2932 = vmul.f32 %v2931, -0.00019511016
          %v2933 = vadd.f32 %v2932, 0.008332121
          %v2934 = vmul.f32 %v2931, %v2933
          %v2935 = vadd.f32 %v2934, -0.16666654
          %v2936 = vmul.f32 %v2931, %v2935
          %v2937 = vadd.f32 %v2936, 1.0
          %v2938 = vmul.f32 %v2937, %v2922
          %vm2939 = vweird.f32 %v470
          %v2940 = vadd.s32 %v2923, 3
          %v2941 = vand.u32 %v2940, 3
          %vm2942 = vcmp.lt.s32.totalorder %v2941, 2
          %vm2943 = vcmp.eq.s32.totalorder %v2941, 0
          %v2944 = vxor.u32 %v2938, 2147483648
          %v2945 = vsel %vm2943, %v2930, %v2944
          %vm2946 = vcmp.eq.s32.totalorder %v2941, 2
          %v2947 = vxor.u32 %v2930, 2147483648
          %v2948 = vsel %vm2946, %v2947, %v2938
          %v2949 = vsel %vm2942, %v2945, %v2948
          %v2950 = vsel %vm2939, nan, %v2949
          %2951 = vst [vmem:[%s228] sm:$0xff] %v625
          %2952 = vst [vmem:[%s228 + $0x8] sm:$0xff] %v780
          %2953 = vst [vmem:[%s228 + $0x10] sm:$0xff] %v935
          %2954 = vst [vmem:[%s228 + $0x18] sm:$0xff] %v1090
          %2955 = vst [vmem:[%s228 + $0x20] sm:$0xff] %v1245
          %2956 = vst [vmem:[%s228 + $0x28] sm:$0xff] %v1400
          %2957 = vst [vmem:[%s228 + $0x30] sm:$0xff] %v1555
          %2958 = vst [vmem:[%s228 + $0x38] sm:$0xff] %v1710
          %2959 = vst [vmem:[%s228 + $0x40] sm:$0xff] %v1865
          %2960 = vst [vmem:[%s228 + $0x48] sm:$0xff] %v2020
          %2961 = vst [vmem:[%s228 + $0x50] sm:$0xff] %v2175
          %2962 = vst [vmem:[%s228 + $0x58] sm:$0xff] %v2330
          %2963 = vst [vmem:[%s228 + $0x60] sm:$0xff] %v2485
          %2964 = vst [vmem:[%s228 + $0x68] sm:$0xff] %v2640
          %2965 = vst [vmem:[%s228 + $0x70] sm:$0xff] %v2795
          %2966 = vst [vmem:[%s228 + $0x78] sm:$0xff] %v2950
        $region40: #{sine_layer_forward.1} parent=31 // pred_fallthru
          _
        %s2967 = sand.u32 %s128, 1
        %s2968 = scalar_lea.sflag [#allocation4], %s2967
        %s2969 = sand.u32 %s128, 1
        %s2970 = smul.addr %s2969, 128
        %s2971 = scalar_lea.vmem [#allocation3], %s2970
        // Predicated region
        $region41: #{sine_layer_forward.1} parent=31 // pred_check
          %p2972 = pneg %p138
        $region42: #{sine_layer_forward.1} parent=31 // pred_check_branch
          %2974 = sbr.rel (%p2972) target = $region44
        $region43: #{sine_layer_forward.1} parent=31 // pred_region
          %s2975 = smul.u32 16, %s22
          %2977 = vsyncadd %s2968, 0
          %s2978 = sadd.s32 %s23, %s2975
          %s2979 = smul.addr %s2978, 8
          %s2980 = scalar_lea.hbm %s3, %s2979
          %s2981 = sshll.u32 %s2971, 4
          %s2982 = int_to_ptr.vmem [resolvable:$true] %s2981
          %s2983 = sshll.u32 %s2980, 4
          %s2984 = int_to_ptr.hbm [resolvable:$true] %s2983
          %2989 = dma.vmem_to_hbm [thread:$0]  %s2982, 2048, %s2984, %s2968, 128, 128, 8
        $region44: #{sine_layer_forward.1} parent=31 // pred_fallthru
          _
      $region32: #{sine_layer_forward.1} parent=5 // pred_fallthru
        _
      %p2990 = scmp.le.s32.totalorder 2, %s12
      // Predicated region
      $region45: #{sine_layer_forward.1} parent=5 // pred_check
        %p2991 = pneg %p2990
      $region46: #{sine_layer_forward.1} parent=5 // pred_check_branch
        %2993 = sbr.rel (%p2991) target = $region48
      $region47: #{sine_layer_forward.1} parent=5 // pred_region
        %s2994 = ssub.s32 %s12, 2
        // Predicated region
        $region49: #{sine_layer_forward.1} parent=47 // pred_check
          %p2995 = pneg %p144
        $region50: #{sine_layer_forward.1} parent=47 // pred_check_branch
          %2997 = sbr.rel (%p2995) target = $region52
        $region51: #{sine_layer_forward.1} parent=47 // pred_region
          %s2998 = sand.u32 %s129, 1
          %s2999 = scalar_lea.sflag [#allocation4], %s2998
          %s3000 = sand.u32 %s129, 1
          %s3001 = smul.addr %s3000, 128
          %s3002 = scalar_lea.vmem [#allocation3], %s3001
          %3004 = dma.done %s2999, 2048
        $region52: #{sine_layer_forward.1} parent=47 // pred_fallthru
          _
      $region48: #{sine_layer_forward.1} parent=5 // pred_fallthru
        _
    $region6: #{sine_layer_forward.1} parent=1 // loop_footer
      %s16 = sadd.s32 1, %s12
    $region7: #{sine_layer_forward.1} parent=1 // loop_footer_branch
      %11 = sbr.rel target = $region3
    $region8: #{sine_layer_forward.1} parent=1 // loop_exit
      _
    %3005 = vsyncpa [#allocation4], 1
    %s3006 = scalar_lea.sflag [#allocation4], 1
    %3007 = vsyncpa %s3006, 1

</llo_original>
